<compile_context>
chip_gen: v5e
topology: v5e:2x2
jax: 0.10.0
libtpu: 0.0.40
codegen_flags: <defaults>
</compile_context>

<pallas_src>
import functools

import jax
import jax.numpy as jnp
from jax import lax
from jax.experimental import pallas as pl
from jax.experimental.pallas import tpu as pltpu

_LANE = 128      # lane width: pad every feature dim to a multiple of this
_SUBLANE = 8


def _round_up(x, m):
    return ((x + m - 1) // m) * m


def _mlp_kernel(num_layers, num_chunks, chunk_rows, x_ref, *refs):
    """Fused MLP: num_layers x (bf16 MXU matmul -> f32 bias-add -> ReLU).

    refs = (w0, b0, w1, b1, ..., w_{L-1}, b_{L-1}, out_ref)
    The (bt, feat) batch tile is processed in `num_chunks` sub-chunks of
    `chunk_rows` rows so per-layer activations stay in vregs rather than
    spilling to VMEM between layers.
    """
    out_ref = refs[-1]
    param_refs = refs[:-1]

    def chunk_body(c, carry):
        row0 = pl.multiple_of(c * chunk_rows, chunk_rows)
        h = x_ref[pl.ds(row0, chunk_rows), :]                    # bf16 (rows, feat_p)
        for l in range(num_layers):
            w = param_refs[2 * l][...]                           # bf16 [in_p, out_p]
            b = param_refs[2 * l + 1][...]                       # f32  [1, out_p]
            acc = jnp.dot(h, w, preferred_element_type=jnp.float32)   # MXU, f32 acc
            acc = jnp.maximum(acc + b, 0.0)                      # bias + ReLU (VPU, f32)
            if l < num_layers - 1:
                h = acc.astype(jnp.bfloat16)
            else:
                out_ref[pl.ds(row0, chunk_rows), :] = acc.astype(out_ref.dtype)
        return carry

    lax.fori_loop(0, num_chunks, chunk_body, 0, unroll=True)


def auto_decoder_forward(x, params, *, batch_tile=256, sub_chunk=128):
    """AutoDecoder forward pass as one fused Pallas kernel.

    x:      [B, feature_dim] float32
    params: list of (W[in, out], b[out]) per layer, in application order
            (PyTorch Linear weights pre-transposed so y = relu(x @ W + b)).
    """
    B, feat = x.shape
    num_layers = len(params)
    out_dim = params[-1][0].shape[1]
    out_dtype = x.dtype
    bf16 = jnp.bfloat16

    # ---- Pad feature dims to lane multiples with zeros. ReLU(0 + 0) = 0, so
    #      padded columns stay zero through every layer -> semantics unchanged.
    feat_p = _round_up(feat, _LANE)
    padded_params = []
    for (w, b) in params:
        d_in, d_out = w.shape
        d_in_p, d_out_p = _round_up(d_in, _LANE), _round_up(d_out, _LANE)
        w_p = jnp.zeros((d_in_p, d_out_p), bf16).at[:d_in, :d_out].set(w.astype(bf16))
        b_p = jnp.zeros((1, d_out_p), jnp.float32).at[0, :d_out].set(
            b.astype(jnp.float32))
        padded_params.append((w_p, b_p))
    out_p = padded_params[-1][0].shape[1]

    # ---- Batch tiling: big M for the MXU; keep >=2 grid steps when the batch
    #      allows (v7x megacore); pad the batch instead of asserting.
    sub_chunk = max(_SUBLANE, _round_up(sub_chunk, _SUBLANE))
    bt = max(sub_chunk, (batch_tile // sub_chunk) * sub_chunk)
    B_min = _round_up(B, sub_chunk)
    if B_min <= bt:
        bt = B_min                                   # tiny batch: one small tile
    elif B_min < 2 * bt:
        bt = _round_up(-(-B_min // 2), sub_chunk)    # split into ~2 tiles
    B_pad = _round_up(B, bt)
    grid = (B_pad // bt,)
    num_chunks = bt // sub_chunk

    # ---- Pad + cast the input (bf16 halves HBM->VMEM bytes; acc stays f32).
    x_p = jnp.zeros((B_pad, feat_p), bf16).at[:B, :feat].set(x.astype(bf16))

    # ---- Specs: x/out tiled over the batch; whole weights/biases per step.
    flat_inputs = [x_p]
    in_specs = [pl.BlockSpec((bt, feat_p), lambda i: (i, 0))]
    for (w_p, b_p) in padded_params:
        flat_inputs.append(w_p)
        in_specs.append(pl.BlockSpec(w_p.shape, lambda i: (0, 0)))
        flat_inputs.append(b_p)
        in_specs.append(pl.BlockSpec(b_p.shape, lambda i: (0, 0)))
    out_spec = pl.BlockSpec((bt, out_p), lambda i: (i, 0))

    # ---- Cost estimate for the XLA scheduler.
    itemsize_out = jnp.dtype(out_dtype).itemsize
    flops = 2 * B_pad * sum(w.shape[0] * w.shape[1] for (w, _) in padded_params)
    bytes_accessed = (
        x_p.size * 2
        + sum(w.size * 2 + b.size * 4 for (w, b) in padded_params)
        + B_pad * out_p * itemsize_out)
    cost = pl.CostEstimate(flops=flops, transcendentals=0,
                           bytes_accessed=bytes_accessed)

    # ---- VMEM budget: every auto-pipelined block is double-buffered.
    max_width = max([feat_p] + [w.shape[1] for (w, _) in padded_params])
    vmem_est = (2 * bt * feat_p * 2                       # x tile (bf16), 2 bufs
                + 2 * bt * out_p * itemsize_out           # out tile, 2 bufs
                + sum(2 * (w.size * 2 + b.size * 4) for (w, b) in padded_params)
                + 4 * sub_chunk * max_width * 4)          # live activations headroom
    vmem_limit = int(min(64 << 20, max(32 << 20, 2 * vmem_est)))  # v7x-safe cap

    kernel = functools.partial(_mlp_kernel, num_layers, num_chunks, sub_chunk)

    out_padded = pl.pallas_call(
        kernel,
        out_shape=jax.ShapeDtypeStruct((B_pad, out_p), out_dtype),
        grid_spec=pltpu.PrefetchScalarGridSpec(
            num_scalar_prefetch=0,
            grid=grid,
            in_specs=in_specs,
            out_specs=out_spec,
        ),
        compiler_params=pltpu.CompilerParams(
            dimension_semantics=("parallel",),
            vmem_limit_bytes=vmem_limit),
        cost_estimate=cost,
    )(*flat_inputs)

    return out_padded[:B, :out_dim]


def init_auto_decoder_params(key, input_dim, feature_dim, dims):
    """Init matching the PyTorch layer shapes (weights stored [in, out])."""
    dims_rev = list(reversed(dims))
    sizes = [feature_dim] + dims_rev + [input_dim]
    params = []
    for l in range(len(sizes) - 1):
        fan_in, fan_out = sizes[l], sizes[l + 1]
        key, kw, kb = jax.random.split(key, 3)
        bound = 1.0 / jnp.sqrt(jnp.float32(fan_in))
        W = jax.random.uniform(kw, (fan_in, fan_out), jnp.float32, -bound, bound)
        b = jax.random.uniform(kb, (fan_out,), jnp.float32, -bound, bound)
        params.append((W, b))
    return params


def auto_decoder_reference(x, params, *, match_bf16=True):
    """Plain-JAX reference. match_bf16 mimics the kernel's bf16-operand /
    f32-accumulation numerics so the comparison tolerance can stay tight."""
    if match_bf16:
        h = x.astype(jnp.bfloat16)
        for l, (w, b) in enumerate(params):
            acc = jnp.dot(h, w.astype(jnp.bfloat16),
                          preferred_element_type=jnp.float32)
            acc = jnp.maximum(acc + b.astype(jnp.float32), 0.0)
            h = acc.astype(jnp.bfloat16) if l < len(params) - 1 else acc
        return h.astype(x.dtype)
    h = x
    for (w, b) in params:
        h = jnp.maximum(jnp.dot(h, w) + b, 0.0)
    return h


if __name__ == "__main__":
    # Shapes consistent with the module. ReLU is applied after the final
    # Linear too (exactly as in the PyTorch Sequential).
    input_dim = 256     # final output width
    feature_dim = 32    # decoder input width
    dims = [64, 128]    # encoder dims; decoder uses reversed(dims) = [128, 64]
    batch = 512         # 2 x batch_tile -> 2 parallel grid steps (uses both v7x TCs)

    key = jax.random.PRNGKey(0)
    kx, kp = jax.random.split(key)
    x = jax.random.normal(kx, (batch, feature_dim), jnp.float32)
    params = init_auto_decoder_params(kp, input_dim, feature_dim, dims)

    out = auto_decoder_forward(x, params, batch_tile=256, sub_chunk=128)
    out = jax.block_until_ready(out)
    assert out.shape == (batch, input_dim), out.shape

    # Tight check vs. bf16-matched reference (same operand precision as kernel).
    ref = auto_decoder_reference(x, params, match_bf16=True)
    assert jnp.allclose(out, ref, atol=1e-2, rtol=1e-2), \
        float(jnp.max(jnp.abs(out - ref)))

    # Loose sanity check vs. full-f32 math (bf16 operands lose mantissa).
    ref_f32 = auto_decoder_reference(x, params, match_bf16=False)
    assert jnp.allclose(out, ref_f32, atol=1e-1, rtol=1e-1), \
        float(jnp.max(jnp.abs(out - ref_f32)))

    print("KERNEL_OK")
</pallas_src>

<mosaic_0001>
module attributes {stable_mosaic.version = 11 : i64} {
  func.func @_mlp_kernel(%arg0: i32, %arg1: memref<256x128xbf16, #tpu.memory_space<vmem>>, %arg2: memref<128x128xbf16, #tpu.memory_space<vmem>>, %arg3: memref<1x128xf32, #tpu.memory_space<vmem>>, %arg4: memref<128x128xbf16, #tpu.memory_space<vmem>>, %arg5: memref<1x128xf32, #tpu.memory_space<vmem>>, %arg6: memref<128x256xbf16, #tpu.memory_space<vmem>>, %arg7: memref<1x256xf32, #tpu.memory_space<vmem>>, %arg8: memref<256x256xf32, #tpu.memory_space<vmem>>) attributes {dimension_semantics = [#tpu.dimension_semantics<parallel>], iteration_bounds = array<i64: 2>, scalar_prefetch = 0 : i64, scratch_operands = 0 : i64, tpu.core_type = #tpu.core_type<tc>, window_params = [{transform_indices = @transform_0, window_bounds = array<i64: 256, 128>}, {pipeline_mode = #tpu.pipeline_mode<synchronous>, transform_indices = @transform_1, window_bounds = array<i64: 128, 128>}, {pipeline_mode = #tpu.pipeline_mode<synchronous>, transform_indices = @transform_2, window_bounds = array<i64: 1, 128>}, {pipeline_mode = #tpu.pipeline_mode<synchronous>, transform_indices = @transform_3, window_bounds = array<i64: 128, 128>}, {pipeline_mode = #tpu.pipeline_mode<synchronous>, transform_indices = @transform_4, window_bounds = array<i64: 1, 128>}, {pipeline_mode = #tpu.pipeline_mode<synchronous>, transform_indices = @transform_5, window_bounds = array<i64: 128, 256>}, {pipeline_mode = #tpu.pipeline_mode<synchronous>, transform_indices = @transform_6, window_bounds = array<i64: 1, 256>}, {transform_indices = @transform_7, window_bounds = array<i64: 256, 256>}]} {
    %c0_i32 = arith.constant 0 : i32
    %c128_i32 = arith.constant 128 : i32
    %0 = arith.muli %c0_i32, %c128_i32 : i32
    %1 = tpu.assume_multiple %0, 128 : i32
    %2 = arith.index_cast %1 : i32 to index
    %c0 = arith.constant 0 : index
    %3 = vector.load %arg1[%2, %c0] : memref<256x128xbf16, #tpu.memory_space<vmem>>, vector<128x128xbf16>
    %c0_0 = arith.constant 0 : index
    %c0_1 = arith.constant 0 : index
    %4 = vector.load %arg2[%c0_0, %c0_1] : memref<128x128xbf16, #tpu.memory_space<vmem>>, vector<128x128xbf16>
    %c0_2 = arith.constant 0 : index
    %c0_3 = arith.constant 0 : index
    %5 = vector.load %arg3[%c0_2, %c0_3] : memref<1x128xf32, #tpu.memory_space<vmem>>, vector<1x128xf32>
    %cst = arith.constant dense<0.000000e+00> : vector<128x128xf32>
    %6 = tpu.matmul %3, %4, %cst {dimension_numbers = #tpu.dot_dimension_numbers<[1], [0], [0], [1], [0, 0, 1, 1], [], []>} : vector<128x128xbf16>, vector<128x128xbf16>, vector<128x128xf32> -> vector<128x128xf32>
    %7 = vector.broadcast %5 : vector<1x128xf32> to vector<128x128xf32>
    %8 = arith.addf %6, %7 : vector<128x128xf32>
    %cst_4 = arith.constant 0.000000e+00 : f32
    %9 = vector.broadcast %cst_4 : f32 to vector<128x128xf32>
    %10 = arith.maximumf %8, %9 : vector<128x128xf32>
    %11 = arith.truncf %10 : vector<128x128xf32> to vector<128x128xbf16>
    %c0_5 = arith.constant 0 : index
    %c0_6 = arith.constant 0 : index
    %12 = vector.load %arg4[%c0_5, %c0_6] : memref<128x128xbf16, #tpu.memory_space<vmem>>, vector<128x128xbf16>
    %c0_7 = arith.constant 0 : index
    %c0_8 = arith.constant 0 : index
    %13 = vector.load %arg5[%c0_7, %c0_8] : memref<1x128xf32, #tpu.memory_space<vmem>>, vector<1x128xf32>
    %cst_9 = arith.constant dense<0.000000e+00> : vector<128x128xf32>
    %14 = tpu.matmul %11, %12, %cst_9 {dimension_numbers = #tpu.dot_dimension_numbers<[1], [0], [0], [1], [0, 0, 1, 1], [], []>} : vector<128x128xbf16>, vector<128x128xbf16>, vector<128x128xf32> -> vector<128x128xf32>
    %15 = vector.broadcast %13 : vector<1x128xf32> to vector<128x128xf32>
    %16 = arith.addf %14, %15 : vector<128x128xf32>
    %cst_10 = arith.constant 0.000000e+00 : f32
    %17 = vector.broadcast %cst_10 : f32 to vector<128x128xf32>
    %18 = arith.maximumf %16, %17 : vector<128x128xf32>
    %19 = arith.truncf %18 : vector<128x128xf32> to vector<128x128xbf16>
    %c0_11 = arith.constant 0 : index
    %c0_12 = arith.constant 0 : index
    %20 = vector.load %arg6[%c0_11, %c0_12] : memref<128x256xbf16, #tpu.memory_space<vmem>>, vector<128x256xbf16>
    %c0_13 = arith.constant 0 : index
    %c0_14 = arith.constant 0 : index
    %21 = vector.load %arg7[%c0_13, %c0_14] : memref<1x256xf32, #tpu.memory_space<vmem>>, vector<1x256xf32>
    %cst_15 = arith.constant dense<0.000000e+00> : vector<128x256xf32>
    %22 = tpu.matmul %19, %20, %cst_15 {dimension_numbers = #tpu.dot_dimension_numbers<[1], [0], [0], [1], [0, 0, 1, 1], [], []>} : vector<128x128xbf16>, vector<128x256xbf16>, vector<128x256xf32> -> vector<128x256xf32>
    %23 = vector.broadcast %21 : vector<1x256xf32> to vector<128x256xf32>
    %24 = arith.addf %22, %23 : vector<128x256xf32>
    %cst_16 = arith.constant 0.000000e+00 : f32
    %25 = vector.broadcast %cst_16 : f32 to vector<128x256xf32>
    %26 = arith.maximumf %24, %25 : vector<128x256xf32>
    %27 = arith.index_cast %1 : i32 to index
    %c0_17 = arith.constant 0 : index
    %28 = vector.load %arg8[%27, %c0_17] : memref<256x256xf32, #tpu.memory_space<vmem>>, vector<128x256xf32>
    tpu.vector_store %arg8[%27, %c0_17], %26 {strides = array<i32>} : memref<256x256xf32, #tpu.memory_space<vmem>>, vector<128x256xf32>,
    %c1_i32 = arith.constant 1 : i32
    %c128_i32_18 = arith.constant 128 : i32
    %29 = arith.muli %c1_i32, %c128_i32_18 : i32
    %30 = tpu.assume_multiple %29, 128 : i32
    %31 = arith.index_cast %30 : i32 to index
    %c0_19 = arith.constant 0 : index
    %32 = vector.load %arg1[%31, %c0_19] : memref<256x128xbf16, #tpu.memory_space<vmem>>, vector<128x128xbf16>
    %c0_20 = arith.constant 0 : index
    %c0_21 = arith.constant 0 : index
    %33 = vector.load %arg2[%c0_20, %c0_21] : memref<128x128xbf16, #tpu.memory_space<vmem>>, vector<128x128xbf16>
    %c0_22 = arith.constant 0 : index
    %c0_23 = arith.constant 0 : index
    %34 = vector.load %arg3[%c0_22, %c0_23] : memref<1x128xf32, #tpu.memory_space<vmem>>, vector<1x128xf32>
    %cst_24 = arith.constant dense<0.000000e+00> : vector<128x128xf32>
    %35 = tpu.matmul %32, %33, %cst_24 {dimension_numbers = #tpu.dot_dimension_numbers<[1], [0], [0], [1], [0, 0, 1, 1], [], []>} : vector<128x128xbf16>, vector<128x128xbf16>, vector<128x128xf32> -> vector<128x128xf32>
    %36 = vector.broadcast %34 : vector<1x128xf32> to vector<128x128xf32>
    %37 = arith.addf %35, %36 : vector<128x128xf32>
    %cst_25 = arith.constant 0.000000e+00 : f32
    %38 = vector.broadcast %cst_25 : f32 to vector<128x128xf32>
    %39 = arith.maximumf %37, %38 : vector<128x128xf32>
    %40 = arith.truncf %39 : vector<128x128xf32> to vector<128x128xbf16>
    %c0_26 = arith.constant 0 : index
    %c0_27 = arith.constant 0 : index
    %41 = vector.load %arg4[%c0_26, %c0_27] : memref<128x128xbf16, #tpu.memory_space<vmem>>, vector<128x128xbf16>
    %c0_28 = arith.constant 0 : index
    %c0_29 = arith.constant 0 : index
    %42 = vector.load %arg5[%c0_28, %c0_29] : memref<1x128xf32, #tpu.memory_space<vmem>>, vector<1x128xf32>
    %cst_30 = arith.constant dense<0.000000e+00> : vector<128x128xf32>
    %43 = tpu.matmul %40, %41, %cst_30 {dimension_numbers = #tpu.dot_dimension_numbers<[1], [0], [0], [1], [0, 0, 1, 1], [], []>} : vector<128x128xbf16>, vector<128x128xbf16>, vector<128x128xf32> -> vector<128x128xf32>
    %44 = vector.broadcast %42 : vector<1x128xf32> to vector<128x128xf32>
    %45 = arith.addf %43, %44 : vector<128x128xf32>
    %cst_31 = arith.constant 0.000000e+00 : f32
    %46 = vector.broadcast %cst_31 : f32 to vector<128x128xf32>
    %47 = arith.maximumf %45, %46 : vector<128x128xf32>
    %48 = arith.truncf %47 : vector<128x128xf32> to vector<128x128xbf16>
    %c0_32 = arith.constant 0 : index
    %c0_33 = arith.constant 0 : index
    %49 = vector.load %arg6[%c0_32, %c0_33] : memref<128x256xbf16, #tpu.memory_space<vmem>>, vector<128x256xbf16>
    %c0_34 = arith.constant 0 : index
    %c0_35 = arith.constant 0 : index
    %50 = vector.load %arg7[%c0_34, %c0_35] : memref<1x256xf32, #tpu.memory_space<vmem>>, vector<1x256xf32>
    %cst_36 = arith.constant dense<0.000000e+00> : vector<128x256xf32>
    %51 = tpu.matmul %48, %49, %cst_36 {dimension_numbers = #tpu.dot_dimension_numbers<[1], [0], [0], [1], [0, 0, 1, 1], [], []>} : vector<128x128xbf16>, vector<128x256xbf16>, vector<128x256xf32> -> vector<128x256xf32>
    %52 = vector.broadcast %50 : vector<1x256xf32> to vector<128x256xf32>
    %53 = arith.addf %51, %52 : vector<128x256xf32>
    %cst_37 = arith.constant 0.000000e+00 : f32
    %54 = vector.broadcast %cst_37 : f32 to vector<128x256xf32>
    %55 = arith.maximumf %53, %54 : vector<128x256xf32>
    %56 = arith.index_cast %30 : i32 to index
    %c0_38 = arith.constant 0 : index
    %57 = vector.load %arg8[%56, %c0_38] : memref<256x256xf32, #tpu.memory_space<vmem>>, vector<128x256xf32>
    tpu.vector_store %arg8[%56, %c0_38], %55 {strides = array<i32>} : memref<256x256xf32, #tpu.memory_space<vmem>>, vector<128x256xf32>,
    %c2_i32 = arith.constant 2 : i32
    return
  }
  func.func @transform_0(%arg0: i32) -> (i32, i32) {
    %c0_i32 = arith.constant 0 : i32
    %c0_i32_0 = arith.constant 0 : i32
    return %arg0, %c0_i32 : i32, i32
  }
  func.func @transform_1(%arg0: i32) -> (i32, i32) {
    %c0_i32 = arith.constant 0 : i32
    %c0_i32_0 = arith.constant 0 : i32
    %c0_i32_1 = arith.constant 0 : i32
    return %c0_i32, %c0_i32_0 : i32, i32
  }
  func.func @transform_2(%arg0: i32) -> (i32, i32) {
    %c0_i32 = arith.constant 0 : i32
    %c0_i32_0 = arith.constant 0 : i32
    %c0_i32_1 = arith.constant 0 : i32
    return %c0_i32, %c0_i32_0 : i32, i32
  }
  func.func @transform_3(%arg0: i32) -> (i32, i32) {
    %c0_i32 = arith.constant 0 : i32
    %c0_i32_0 = arith.constant 0 : i32
    %c0_i32_1 = arith.constant 0 : i32
    return %c0_i32, %c0_i32_0 : i32, i32
  }
  func.func @transform_4(%arg0: i32) -> (i32, i32) {
    %c0_i32 = arith.constant 0 : i32
    %c0_i32_0 = arith.constant 0 : i32
    %c0_i32_1 = arith.constant 0 : i32
    return %c0_i32, %c0_i32_0 : i32, i32
  }
  func.func @transform_5(%arg0: i32) -> (i32, i32) {
    %c0_i32 = arith.constant 0 : i32
    %c0_i32_0 = arith.constant 0 : i32
    %c0_i32_1 = arith.constant 0 : i32
    return %c0_i32, %c0_i32_0 : i32, i32
  }
  func.func @transform_6(%arg0: i32) -> (i32, i32) {
    %c0_i32 = arith.constant 0 : i32
    %c0_i32_0 = arith.constant 0 : i32
    %c0_i32_1 = arith.constant 0 : i32
    return %c0_i32, %c0_i32_0 : i32, i32
  }
  func.func @transform_7(%arg0: i32) -> (i32, i32) {
    %c0_i32 = arith.constant 0 : i32
    %c0_i32_0 = arith.constant 0 : i32
    return %arg0, %c0_i32 : i32, i32
  }
}

</mosaic_0001>

<llo_original>
// kernel: tpu_custom_call.1
$region0: #{tpu_custom_call.1}
  #allocation0 [shape = 'u32[]', space=smem, size = 0x4, offset = 0x4, fixed_abs, tag = 'smem constant byte address 0x4 - core index']
  #allocation1 [shape = 'u32[72,128]{1,0:T(1,128)}', space=vmem, size = 0x9000, scoped, tag = 'internal scratch']
  %s0 = inlined_call_operand.hbm [shape: bf16[512,128], index: 0, kind: input, shape index: {}]
  %s1 = inlined_call_operand.hbm [shape: bf16[128,128], index: 1, kind: input, shape index: {}]
  %s2 = inlined_call_operand.vmem [shape: f32[1,128], index: 2, kind: input, shape index: {}]
  %s3 = inlined_call_operand.hbm [shape: bf16[128,128], index: 3, kind: input, shape index: {}]
  %s4 = inlined_call_operand.hbm [shape: f32[1,128], index: 4, kind: input, shape index: {}]
  %s5 = inlined_call_operand.hbm [shape: bf16[128,256], index: 5, kind: input, shape index: {}]
  %s6 = inlined_call_operand.vmem [shape: f32[1,256], index: 6, kind: input, shape index: {}]
  %s7 = inlined_call_operand.hbm [shape: f32[512,256], index: 7, kind: output, shape index: {}]
  %s8 = sld [smem:[#allocation0]]
  $region81: #{tpu_custom_call.1} parent=0
    _
  %s10 = ssub.s32 1, %s8
  %s11 = scalar_select 0, %s10, %s8
  $region1: #{tpu_custom_call.1} parent=0
    #allocation2 [shape = 'u8[131072]{0}', space=vmem, size = 0x20000, scoped, tag = 'input window, operand 0']
    #allocation3 [shape = 's32[2]{0}', space=sflag, size = 0x8, scoped, tag = 'scoped memory for tpu_custom_call.1']
    #allocation4 [shape = 's32[2]{0}', space=sflag, size = 0x8, scoped, tag = 'scoped memory for tpu_custom_call.1']
    #allocation5 [shape = 'u8[32768]{0}', space=vmem, size = 0x8000, scoped, tag = 'input window, operand 1, single buffered']
    #allocation6 [shape = 's32[1]{0}', space=sflag, size = 0x4, scoped, tag = 'scoped memory for tpu_custom_call.1']
    #allocation7 [shape = 'u8[32768]{0}', space=vmem, size = 0x8000, scoped, tag = 'input window, operand 3, single buffered']
    #allocation8 [shape = 'u8[512]{0}', space=vmem, size = 0x400, scoped, tag = 'input window, operand 4, single buffered']
    #allocation9 [shape = 's32[1]{0}', space=sflag, size = 0x4, scoped, tag = 'scoped memory for tpu_custom_call.1']
    #allocation10 [shape = 'u8[65536]{0}', space=vmem, size = 0x10000, scoped, tag = 'input window, operand 5, single buffered']
    #allocation11 [shape = 'u8[524288]{0}', space=vmem, size = 0x80000, scoped, tag = 'output window, operand 0']
    %12 = vsyncpa [#allocation3], 0
    %s13 = scalar_lea.sflag [#allocation3], 1
    %14 = vsyncpa %s13, 0
    %15 = vsyncpa [#allocation6], 0
    %16 = vsyncpa [#allocation9], 0
    %17 = vsyncpa [#allocation4], 0
    %s18 = scalar_lea.sflag [#allocation4], 1
    %19 = vsyncpa %s18, 0
    loop: start=0, step=1, limit=4
    $region2: #{tpu_custom_call.1} parent=1 // loop_pre_header
      _
    $region3: #{tpu_custom_call.1} parent=1 // loop_header
      %s21 = sphi 0, %s25
      %p22 = scmp.ge.s32.totalorder %s21, 4
      %s31 = sphi 0, %s33
      %s34 = sphi 0, %s31
      %s35 = sphi 0, %s34
      %s51 = sphi 0, %s35
      %s55 = sphi 0, %s55
      %s57 = sphi 0, %s55
      %s58 = sphi 0, %s57
      %s72 = sphi 0, %s58
      %s76 = sphi 0, %s76
      %s78 = sphi 0, %s76
      %s79 = sphi 0, %s78
      %s93 = sphi 0, %s79
      %s97 = sphi 0, %s97
      %s99 = sphi 0, %s97
      %s100 = sphi 0, %s99
      %s114 = sphi 0, %s100
      %s118 = sphi 0, %s118
      %s120 = sphi 0, %s118
      %s121 = sphi 0, %s120
      %s135 = sphi 0, %s121
      %s139 = sphi 0, %s139
      %s141 = sphi 0, %s139
      %s142 = sphi 0, %s141
      %s156 = sphi 0, %s142
      %s160 = sphi 0, %s160
      %s162 = sphi 0, %s160
      %s163 = sphi 0, %s162
      %s177 = sphi 0, %s163
      %s183 = sphi 0, %s185
      %s186 = sphi 0, %s183
      %s187 = sphi 0, %s186
      %s203 = sphi 0, %s187
    $region4: #{tpu_custom_call.1} parent=1 // loop_header_branch
      %24 = sbr.rel (%p22) target = $region8
    $region5: #{tpu_custom_call.1} parent=1 // loop_body
      %s26 = ssub.s32 %s21, 1
      %s27 = ssub.s32 %s21, 2
      %s28 = sadd.s32 %s21, 1
      %s29 = ssub.s32 %s21, %s28
      %p30 = scmp.eq.s32.totalorder %s29, 0
      %s32 = sadd.s32 %s31, 1
      %s33 = scalar_select %p30, %s31, %s32
      %p36 = pneg %p30
      %p37 = scmp.eq.s32.totalorder %s21, 1
      %p38 = por %p36, %p37
      %p39 = scmp.ne.s32.totalorder %s31, %s34
      %p40 = scmp.eq.s32.totalorder %s21, 0
      %p41 = por %p39, %p40
      %p42 = scmp.ne.s32.totalorder %s31, %s34
      %p43 = scmp.eq.s32.totalorder %s26, 1
      %p44 = por %p42, %p43
      %p45 = scmp.ne.s32.totalorder %s34, %s35
      %p46 = scmp.eq.s32.totalorder %s26, 0
      %p47 = por %p45, %p46
      %p48 = scmp.ne.s32.totalorder %s34, %s35
      %p49 = scmp.eq.s32.totalorder %s27, 1
      %p50 = por %p48, %p49
      %p52 = scmp.ne.s32.totalorder %s35, %s51
      %p53 = scmp.eq.s32.totalorder %s27, 0
      %p54 = por %p52, %p53
      %s56 = sadd.s32 %s55, 1
      %p59 = scmp.eq.s32.totalorder %s21, 1
      %p60 = scmp.ne.s32.totalorder %s55, %s57
      %p61 = scmp.eq.s32.totalorder %s21, 0
      %p62 = por %p60, %p61
      %p63 = scmp.ne.s32.totalorder %s55, %s57
      %p64 = scmp.eq.s32.totalorder %s26, 1
      %p65 = por %p63, %p64
      %p66 = scmp.ne.s32.totalorder %s57, %s58
      %p67 = scmp.eq.s32.totalorder %s26, 0
      %p68 = por %p66, %p67
      %p69 = scmp.ne.s32.totalorder %s57, %s58
      %p70 = scmp.eq.s32.totalorder %s27, 1
      %p71 = por %p69, %p70
      %p73 = scmp.ne.s32.totalorder %s58, %s72
      %p74 = scmp.eq.s32.totalorder %s27, 0
      %p75 = por %p73, %p74
      %s77 = sadd.s32 %s76, 1
      %p80 = scmp.eq.s32.totalorder %s21, 1
      %p81 = scmp.ne.s32.totalorder %s76, %s78
      %p82 = scmp.eq.s32.totalorder %s21, 0
      %p83 = por %p81, %p82
      %p84 = scmp.ne.s32.totalorder %s76, %s78
      %p85 = scmp.eq.s32.totalorder %s26, 1
      %p86 = por %p84, %p85
      %p87 = scmp.ne.s32.totalorder %s78, %s79
      %p88 = scmp.eq.s32.totalorder %s26, 0
      %p89 = por %p87, %p88
      %p90 = scmp.ne.s32.totalorder %s78, %s79
      %p91 = scmp.eq.s32.totalorder %s27, 1
      %p92 = por %p90, %p91
      %p94 = scmp.ne.s32.totalorder %s79, %s93
      %p95 = scmp.eq.s32.totalorder %s27, 0
      %p96 = por %p94, %p95
      %s98 = sadd.s32 %s97, 1
      %p101 = scmp.eq.s32.totalorder %s21, 1
      %p102 = scmp.ne.s32.totalorder %s97, %s99
      %p103 = scmp.eq.s32.totalorder %s21, 0
      %p104 = por %p102, %p103
      %p105 = scmp.ne.s32.totalorder %s97, %s99
      %p106 = scmp.eq.s32.totalorder %s26, 1
      %p107 = por %p105, %p106
      %p108 = scmp.ne.s32.totalorder %s99, %s100
      %p109 = scmp.eq.s32.totalorder %s26, 0
      %p110 = por %p108, %p109
      %p111 = scmp.ne.s32.totalorder %s99, %s100
      %p112 = scmp.eq.s32.totalorder %s27, 1
      %p113 = por %p111, %p112
      %p115 = scmp.ne.s32.totalorder %s100, %s114
      %p116 = scmp.eq.s32.totalorder %s27, 0
      %p117 = por %p115, %p116
      %s119 = sadd.s32 %s118, 1
      %p122 = scmp.eq.s32.totalorder %s21, 1
      %p123 = scmp.ne.s32.totalorder %s118, %s120
      %p124 = scmp.eq.s32.totalorder %s21, 0
      %p125 = por %p123, %p124
      %p126 = scmp.ne.s32.totalorder %s118, %s120
      %p127 = scmp.eq.s32.totalorder %s26, 1
      %p128 = por %p126, %p127
      %p129 = scmp.ne.s32.totalorder %s120, %s121
      %p130 = scmp.eq.s32.totalorder %s26, 0
      %p131 = por %p129, %p130
      %p132 = scmp.ne.s32.totalorder %s120, %s121
      %p133 = scmp.eq.s32.totalorder %s27, 1
      %p134 = por %p132, %p133
      %p136 = scmp.ne.s32.totalorder %s121, %s135
      %p137 = scmp.eq.s32.totalorder %s27, 0
      %p138 = por %p136, %p137
      %s140 = sadd.s32 %s139, 1
      %p143 = scmp.eq.s32.totalorder %s21, 1
      %p144 = scmp.ne.s32.totalorder %s139, %s141
      %p145 = scmp.eq.s32.totalorder %s21, 0
      %p146 = por %p144, %p145
      %p147 = scmp.ne.s32.totalorder %s139, %s141
      %p148 = scmp.eq.s32.totalorder %s26, 1
      %p149 = por %p147, %p148
      %p150 = scmp.ne.s32.totalorder %s141, %s142
      %p151 = scmp.eq.s32.totalorder %s26, 0
      %p152 = por %p150, %p151
      %p153 = scmp.ne.s32.totalorder %s141, %s142
      %p154 = scmp.eq.s32.totalorder %s27, 1
      %p155 = por %p153, %p154
      %p157 = scmp.ne.s32.totalorder %s142, %s156
      %p158 = scmp.eq.s32.totalorder %s27, 0
      %p159 = por %p157, %p158
      %s161 = sadd.s32 %s160, 1
      %p164 = scmp.eq.s32.totalorder %s21, 1
      %p165 = scmp.ne.s32.totalorder %s160, %s162
      %p166 = scmp.eq.s32.totalorder %s21, 0
      %p167 = por %p165, %p166
      %p168 = scmp.ne.s32.totalorder %s160, %s162
      %p169 = scmp.eq.s32.totalorder %s26, 1
      %p170 = por %p168, %p169
      %p171 = scmp.ne.s32.totalorder %s162, %s163
      %p172 = scmp.eq.s32.totalorder %s26, 0
      %p173 = por %p171, %p172
      %p174 = scmp.ne.s32.totalorder %s162, %s163
      %p175 = scmp.eq.s32.totalorder %s27, 1
      %p176 = por %p174, %p175
      %p178 = scmp.ne.s32.totalorder %s163, %s177
      %p179 = scmp.eq.s32.totalorder %s27, 0
      %p180 = por %p178, %p179
      %s181 = ssub.s32 %s21, %s28
      %p182 = scmp.eq.s32.totalorder %s181, 0
      %s184 = sadd.s32 %s183, 1
      %s185 = scalar_select %p182, %s183, %s184
      %p188 = pneg %p182
      %p189 = scmp.eq.s32.totalorder %s21, 1
      %p190 = por %p188, %p189
      %p191 = scmp.ne.s32.totalorder %s183, %s186
      %p192 = scmp.eq.s32.totalorder %s21, 0
      %p193 = por %p191, %p192
      %p194 = scmp.ne.s32.totalorder %s183, %s186
      %p195 = scmp.eq.s32.totalorder %s26, 1
      %p196 = por %p194, %p195
      %p197 = scmp.ne.s32.totalorder %s186, %s187
      %p198 = scmp.eq.s32.totalorder %s26, 0
      %p199 = por %p197, %p198
      %p200 = scmp.ne.s32.totalorder %s186, %s187
      %p201 = scmp.eq.s32.totalorder %s27, 1
      %p202 = por %p200, %p201
      %p204 = scmp.ne.s32.totalorder %s187, %s203
      %p205 = scmp.eq.s32.totalorder %s27, 0
      %p206 = por %p204, %p205
      %p207 = scmp.le.s32.totalorder 1, %s21
      %p208 = scmp.lt.s32.totalorder %s21, 3
      %p209 = pnand %p207, %p208
      %p210 = pneg %p209
      // Predicated region
      $region9: #{tpu_custom_call.1} parent=5 // pred_check
        _
      $region10: #{tpu_custom_call.1} parent=5 // pred_check_branch
        %212 = sbr.rel (%p209) target = $region12
      $region11: #{tpu_custom_call.1} parent=5 // pred_region
        %s213 = ssub.s32 %s21, 1
        // Predicated region
        $region13: #{tpu_custom_call.1} parent=11 // pred_check
          %p214 = pneg %p68
        $region14: #{tpu_custom_call.1} parent=11 // pred_check_branch
          %216 = sbr.rel (%p214) target = $region16
        $region15: #{tpu_custom_call.1} parent=11 // pred_region
          %218 = vsyncadd [#allocation6], 0
          %s219 = sshll.u32 %s1, 4
          %s220 = int_to_ptr.hbm [resolvable:$true] %s219
          %s221 = sshll.u32 [#allocation5], 4
          %s222 = int_to_ptr.vmem [resolvable:$true] %s221
          %227 = dma.hbm_to_vmem [thread:$0]  %s220, 1024, %s222, [#allocation6], 64, 64, 4
        $region16: #{tpu_custom_call.1} parent=11 // pred_fallthru
          _
        // Predicated region
        $region17: #{tpu_custom_call.1} parent=11 // pred_check
          %p228 = pneg %p89
        $region18: #{tpu_custom_call.1} parent=11 // pred_check_branch
          %230 = sbr.rel (%p228) target = $region20
        $region19: #{tpu_custom_call.1} parent=11 // pred_region
          _
        $region20: #{tpu_custom_call.1} parent=11 // pred_fallthru
          _
        // Predicated region
        $region21: #{tpu_custom_call.1} parent=11 // pred_check
          %p231 = pneg %p110
        $region22: #{tpu_custom_call.1} parent=11 // pred_check_branch
          %233 = sbr.rel (%p231) target = $region24
        $region23: #{tpu_custom_call.1} parent=11 // pred_region
          %235 = vsyncadd [#allocation6], 0
          %s236 = sshll.u32 %s3, 4
          %s237 = int_to_ptr.hbm [resolvable:$true] %s236
          %s238 = sshll.u32 [#allocation7], 4
          %s239 = int_to_ptr.vmem [resolvable:$true] %s238
          %244 = dma.hbm_to_vmem [thread:$0]  %s237, 1024, %s239, [#allocation6], 64, 64, 4
        $region24: #{tpu_custom_call.1} parent=11 // pred_fallthru
          _
        // Predicated region
        $region25: #{tpu_custom_call.1} parent=11 // pred_check
          %p245 = pneg %p131
        $region26: #{tpu_custom_call.1} parent=11 // pred_check_branch
          %247 = sbr.rel (%p245) target = $region28
        $region27: #{tpu_custom_call.1} parent=11 // pred_region
          %249 = vsyncadd [#allocation9], 0
          %s251 = sshll.u32 %s4, 4
          %s252 = int_to_ptr.hbm [resolvable:$true] %s251
          %s253 = sshll.u32 [#allocation8], 4
          %s254 = int_to_ptr.vmem [resolvable:$true] %s253
          %256 = dma.hbm_to_vmem [thread:$0]  %s252, 16, %s254, [#allocation9]
        $region28: #{tpu_custom_call.1} parent=11 // pred_fallthru
          _
        // Predicated region
        $region29: #{tpu_custom_call.1} parent=11 // pred_check
          %p257 = pneg %p152
        $region30: #{tpu_custom_call.1} parent=11 // pred_check_branch
          %259 = sbr.rel (%p257) target = $region32
        $region31: #{tpu_custom_call.1} parent=11 // pred_region
          %261 = vsyncadd [#allocation9], 0
          %s262 = sshll.u32 %s5, 4
          %s263 = int_to_ptr.hbm [resolvable:$true] %s262
          %s264 = sshll.u32 [#allocation10], 4
          %s265 = int_to_ptr.vmem [resolvable:$true] %s264
          %270 = dma.hbm_to_vmem [thread:$0]  %s263, 2048, %s265, [#allocation9], 128, 128, 8
        $region32: #{tpu_custom_call.1} parent=11 // pred_fallthru
          _
        // Predicated region
        $region33: #{tpu_custom_call.1} parent=11 // pred_check
          %p271 = pneg %p173
        $region34: #{tpu_custom_call.1} parent=11 // pred_check_branch
          %273 = sbr.rel (%p271) target = $region36
        $region35: #{tpu_custom_call.1} parent=11 // pred_region
          _
        $region36: #{tpu_custom_call.1} parent=11 // pred_fallthru
          _
      $region12: #{tpu_custom_call.1} parent=5 // pred_fallthru
        _
      %p274 = scmp.lt.s32.totalorder %s21, 2
      // Predicated region
      $region37: #{tpu_custom_call.1} parent=5 // pred_check
        %p275 = pneg %p274
      $region38: #{tpu_custom_call.1} parent=5 // pred_check_branch
        %277 = sbr.rel (%p275) target = $region40
      $region39: #{tpu_custom_call.1} parent=5 // pred_region
        // Predicated region
        $region41: #{tpu_custom_call.1} parent=39 // pred_check
          %p278 = pneg %p41
        $region42: #{tpu_custom_call.1} parent=39 // pred_check_branch
          %280 = sbr.rel (%p278) target = $region44
        $region43: #{tpu_custom_call.1} parent=39 // pred_region
          %s281 = sand.u32 %s31, 1
          %s282 = scalar_lea.sflag [#allocation3], %s281
          %s283 = sand.u32 %s31, 1
          %s284 = smul.addr %s283, 128
          %s285 = scalar_lea.vmem [#allocation2], %s284
          %s286 = smul.u32 32, %s21
          %288 = vsyncadd %s282, 0
          %s289 = smul.addr %s286, 4
          %s290 = scalar_lea.hbm %s0, %s289
          %s291 = sshll.u32 %s290, 4
          %s292 = int_to_ptr.hbm [resolvable:$true] %s291
          %s293 = sshll.u32 %s285, 4
          %s294 = int_to_ptr.vmem [resolvable:$true] %s293
          %299 = dma.hbm_to_vmem [thread:$0]  %s292, 2048, %s294, %s282, 64, 64, 4
        $region44: #{tpu_custom_call.1} parent=39 // pred_fallthru
          _
      $region40: #{tpu_custom_call.1} parent=5 // pred_fallthru
        _
      %p300 = scmp.le.s32.totalorder 1, %s21
      %p301 = scmp.lt.s32.totalorder %s21, 3
      %p302 = pnand %p300, %p301
      %p303 = pneg %p302
      // Predicated region
      $region45: #{tpu_custom_call.1} parent=5 // pred_check
        _
      $region46: #{tpu_custom_call.1} parent=5 // pred_check_branch
        %305 = sbr.rel (%p302) target = $region48
      $region47: #{tpu_custom_call.1} parent=5 // pred_region
        %s306 = ssub.s32 %s21, 1
        %s307 = sand.u32 %s34, 1
        %s308 = scalar_lea.sflag [#allocation3], %s307
        %s309 = sand.u32 %s34, 1
        %s310 = smul.addr %s309, 128
        %s311 = scalar_lea.vmem [#allocation2], %s310
        // Predicated region
        $region49: #{tpu_custom_call.1} parent=47 // pred_check
          %p312 = pneg %p47
        $region50: #{tpu_custom_call.1} parent=47 // pred_check_branch
          %314 = sbr.rel (%p312) target = $region52
        $region51: #{tpu_custom_call.1} parent=47 // pred_region
          %316 = dma.done %s308, 2048
        $region52: #{tpu_custom_call.1} parent=47 // pred_fallthru
          _
        // Predicated region
        $region53: #{tpu_custom_call.1} parent=47 // pred_check
          %p317 = pneg %p68
        $region54: #{tpu_custom_call.1} parent=47 // pred_check_branch
          %319 = sbr.rel (%p317) target = $region56
        $region55: #{tpu_custom_call.1} parent=47 // pred_region
          %321 = dma.done [#allocation6], 1024
        $region56: #{tpu_custom_call.1} parent=47 // pred_fallthru
          _
        // Predicated region
        $region57: #{tpu_custom_call.1} parent=47 // pred_check
          %p322 = pneg %p110
        $region58: #{tpu_custom_call.1} parent=47 // pred_check_branch
          %324 = sbr.rel (%p322) target = $region60
        $region59: #{tpu_custom_call.1} parent=47 // pred_region
          %326 = dma.done [#allocation6], 1024
        $region60: #{tpu_custom_call.1} parent=47 // pred_fallthru
          _
        // Predicated region
        $region61: #{tpu_custom_call.1} parent=47 // pred_check
          %p327 = pneg %p131
        $region62: #{tpu_custom_call.1} parent=47 // pred_check_branch
          %329 = sbr.rel (%p327) target = $region64
        $region63: #{tpu_custom_call.1} parent=47 // pred_region
          %331 = dma.done [#allocation9], 16
        $region64: #{tpu_custom_call.1} parent=47 // pred_fallthru
          _
        // Predicated region
        $region65: #{tpu_custom_call.1} parent=47 // pred_check
          %p332 = pneg %p152
        $region66: #{tpu_custom_call.1} parent=47 // pred_check_branch
          %334 = sbr.rel (%p332) target = $region68
        $region67: #{tpu_custom_call.1} parent=47 // pred_region
          %336 = dma.done [#allocation9], 2048
        $region68: #{tpu_custom_call.1} parent=47 // pred_fallthru
          _
        %s337 = sand.u32 %s34, 1
        %s338 = scalar_lea.sflag [#allocation3], %s337
        %s339 = sand.u32 %s34, 1
        %s340 = smul.addr %s339, 128
        %s341 = scalar_lea.vmem [#allocation2], %s340
        %p342 = pneg %p47
        %p343 = pneg %p44
        %p344 = pneg %p68
        %p345 = pneg %p65
        %p346 = pneg %p89
        %p347 = pneg %p86
        %p348 = pneg %p110
        %p349 = pneg %p107
        %p350 = pneg %p131
        %p351 = pneg %p128
        %p352 = pneg %p152
        %p353 = pneg %p149
        %p354 = pneg %p173
        %p355 = pneg %p170
        %p356 = pneg %p199
        %p357 = pneg %p196
        %s358 = sand.u32 %s186, 1
        %s359 = scalar_lea.sflag [#allocation4], %s358
        %s360 = sand.u32 %s186, 1
        %s361 = smul.addr %s360, 512
        %s362 = scalar_lea.vmem [#allocation11], %s361
        %s363 = smul.u32 32, %s26
        %s364 = smul.u32 32, %s26
        %v365 = vld [vmem:[%s311] sm:$0xf]
        %v366 = vld [vmem:[%s311 + $0x4] sm:$0xf]
        %v367 = vld [vmem:[%s311 + $0x8] sm:$0xf]
        %v368 = vld [vmem:[%s311 + $0xc] sm:$0xf]
        %v369 = vld [vmem:[%s311 + $0x10] sm:$0xf]
        %v370 = vld [vmem:[%s311 + $0x14] sm:$0xf]
        %v371 = vld [vmem:[%s311 + $0x18] sm:$0xf]
        %v372 = vld [vmem:[%s311 + $0x1c] sm:$0xf]
        %v373 = vld [vmem:[%s311 + $0x20] sm:$0xf]
        %v374 = vld [vmem:[%s311 + $0x24] sm:$0xf]
        %v375 = vld [vmem:[%s311 + $0x28] sm:$0xf]
        %v376 = vld [vmem:[%s311 + $0x2c] sm:$0xf]
        %v377 = vld [vmem:[%s311 + $0x30] sm:$0xf]
        %v378 = vld [vmem:[%s311 + $0x34] sm:$0xf]
        %v379 = vld [vmem:[%s311 + $0x38] sm:$0xf]
        %v380 = vld [vmem:[%s311 + $0x3c] sm:$0xf]
        %v381 = vld [vmem:[#allocation5] sm:$0xf]
        %v382 = vld [vmem:[#allocation5 + $0x4] sm:$0xf]
        %v383 = vld [vmem:[#allocation5 + $0x8] sm:$0xf]
        %v384 = vld [vmem:[#allocation5 + $0xc] sm:$0xf]
        %v385 = vld [vmem:[#allocation5 + $0x10] sm:$0xf]
        %v386 = vld [vmem:[#allocation5 + $0x14] sm:$0xf]
        %v387 = vld [vmem:[#allocation5 + $0x18] sm:$0xf]
        %v388 = vld [vmem:[#allocation5 + $0x1c] sm:$0xf]
        %v389 = vld [vmem:[#allocation5 + $0x20] sm:$0xf]
        %v390 = vld [vmem:[#allocation5 + $0x24] sm:$0xf]
        %v391 = vld [vmem:[#allocation5 + $0x28] sm:$0xf]
        %v392 = vld [vmem:[#allocation5 + $0x2c] sm:$0xf]
        %v393 = vld [vmem:[#allocation5 + $0x30] sm:$0xf]
        %v394 = vld [vmem:[#allocation5 + $0x34] sm:$0xf]
        %v395 = vld [vmem:[#allocation5 + $0x38] sm:$0xf]
        %v396 = vld [vmem:[#allocation5 + $0x3c] sm:$0xf]
        %v397 = vld [vmem:[%s2] sm:$0x1]
        %v399 = vperm.slane %v397, 0
        %v417 = vunpack.c.l.b16 %v365
        %v418 = vunpack.c.l.b16 %v366
        %v419 = vunpack.c.l.b16 %v367
        %v420 = vunpack.c.l.b16 %v368
        %v421 = vunpack.c.l.b16 %v369
        %v422 = vunpack.c.l.b16 %v370
        %v423 = vunpack.c.l.b16 %v371
        %v424 = vunpack.c.l.b16 %v372
        %v425 = vunpack.c.l.b16 %v373
        %v426 = vunpack.c.l.b16 %v374
        %v427 = vunpack.c.l.b16 %v375
        %v428 = vunpack.c.l.b16 %v376
        %v429 = vunpack.c.l.b16 %v377
        %v430 = vunpack.c.l.b16 %v378
        %v431 = vunpack.c.l.b16 %v379
        %v432 = vunpack.c.l.b16 %v380
        %v433 = vpack.c.b16 %v418, %v417
        %v434 = vpack.c.b16 %v420, %v419
        %v435 = vpack.c.b16 %v422, %v421
        %v436 = vpack.c.b16 %v424, %v423
        %v437 = vpack.c.b16 %v426, %v425
        %v438 = vpack.c.b16 %v428, %v427
        %v439 = vpack.c.b16 %v430, %v429
        %v440 = vpack.c.b16 %v432, %v431
        %v465 = vunpack.c.l.b16 %v381
        %v466 = vunpack.c.l.b16 %v382
        %v467 = vunpack.c.l.b16 %v383
        %v468 = vunpack.c.l.b16 %v384
        %v469 = vunpack.c.l.b16 %v385
        %v470 = vunpack.c.l.b16 %v386
        %v471 = vunpack.c.l.b16 %v387
        %v472 = vunpack.c.l.b16 %v388
        %v473 = vunpack.c.l.b16 %v389
        %v474 = vunpack.c.l.b16 %v390
        %v475 = vunpack.c.l.b16 %v391
        %v476 = vunpack.c.l.b16 %v392
        %v477 = vunpack.c.l.b16 %v393
        %v478 = vunpack.c.l.b16 %v394
        %v479 = vunpack.c.l.b16 %v395
        %v480 = vunpack.c.l.b16 %v396
        %v481 = vpack.c.b16 %v466, %v465
        %v482 = vpack.c.b16 %v468, %v467
        %v483 = vpack.c.b16 %v470, %v469
        %v484 = vpack.c.b16 %v472, %v471
        %v485 = vpack.c.b16 %v474, %v473
        %v486 = vpack.c.b16 %v476, %v475
        %v487 = vpack.c.b16 %v478, %v477
        %v488 = vpack.c.b16 %v480, %v479
        %497 = vmatpush.bf16.msra.mxu0 %v488
        %498 = vmatpush.bf16.msra.mxu0 %v487
        %499 = vmatpush.bf16.msra.mxu0 %v486
        %500 = vmatpush.bf16.msra.mxu0 %v485
        %501 = vmatpush.bf16.msra.mxu0 %v484
        %502 = vmatpush.bf16.msra.mxu0 %v483
        %503 = vmatpush.bf16.msra.mxu0 %v482
        %504 = vmatpush.bf16.msra.mxu0 %v481
        %505 = vmatmul.bf16.gmra.mxu0 %v433
        %v506 = vpop.f32.mrf.mxu0
        %v507 = vadd.f32 %v399, %v506
        %v508 = vpop.f32.mrf.mxu0
        %v509 = vadd.f32 %v399, %v508
        %510 = vmatmul.bf16.gmra.mxu0 %v434
        %v511 = vpop.f32.mrf.mxu0
        %v512 = vadd.f32 %v399, %v511
        %v513 = vpop.f32.mrf.mxu0
        %v514 = vadd.f32 %v399, %v513
        %515 = vmatmul.bf16.gmra.mxu0 %v435
        %v516 = vpop.f32.mrf.mxu0
        %v517 = vadd.f32 %v399, %v516
        %v518 = vpop.f32.mrf.mxu0
        %v519 = vadd.f32 %v399, %v518
        %520 = vmatmul.bf16.gmra.mxu0 %v436
        %v521 = vpop.f32.mrf.mxu0
        %v522 = vadd.f32 %v399, %v521
        %v523 = vpop.f32.mrf.mxu0
        %v524 = vadd.f32 %v399, %v523
        %525 = vmatmul.bf16.gmra.mxu0 %v437
        %v526 = vpop.f32.mrf.mxu0
        %v527 = vadd.f32 %v399, %v526
        %v528 = vpop.f32.mrf.mxu0
        %v529 = vadd.f32 %v399, %v528
        %530 = vmatmul.bf16.gmra.mxu0 %v438
        %v531 = vpop.f32.mrf.mxu0
        %v532 = vadd.f32 %v399, %v531
        %v533 = vpop.f32.mrf.mxu0
        %v534 = vadd.f32 %v399, %v533
        %535 = vmatmul.bf16.gmra.mxu0 %v439
        %v536 = vpop.f32.mrf.mxu0
        %v537 = vadd.f32 %v399, %v536
        %v538 = vpop.f32.mrf.mxu0
        %v539 = vadd.f32 %v399, %v538
        %540 = vmatmul.bf16.gmra.mxu0 %v440
        %v541 = vpop.f32.mrf.mxu0
        %v542 = vadd.f32 %v399, %v541
        %v543 = vpop.f32.mrf.mxu0
        %v544 = vadd.f32 %v399, %v543
        %545 = vdwg.mxu0
        %v546 = vmax.f32 %v507, 0.0
        %v547 = vmax.f32 %v509, 0.0
        %v548 = vmax.f32 %v512, 0.0
        %v549 = vmax.f32 %v514, 0.0
        %v550 = vmax.f32 %v517, 0.0
        %v551 = vmax.f32 %v519, 0.0
        %v552 = vmax.f32 %v522, 0.0
        %v553 = vmax.f32 %v524, 0.0
        %v554 = vmax.f32 %v527, 0.0
        %v555 = vmax.f32 %v529, 0.0
        %v556 = vmax.f32 %v532, 0.0
        %v557 = vmax.f32 %v534, 0.0
        %v558 = vmax.f32 %v537, 0.0
        %v559 = vmax.f32 %v539, 0.0
        %v560 = vmax.f32 %v542, 0.0
        %v561 = vmax.f32 %v544, 0.0
        %v562 = vpack.c.bf16 %v547, %v546
        %v563 = vpack.c.bf16 %v549, %v548
        %v564 = vpack.c.bf16 %v551, %v550
        %v565 = vpack.c.bf16 %v553, %v552
        %v566 = vpack.c.bf16 %v555, %v554
        %v567 = vpack.c.bf16 %v557, %v556
        %v568 = vpack.c.bf16 %v559, %v558
        %v569 = vpack.c.bf16 %v561, %v560
        %v570 = vld [vmem:[#allocation7] sm:$0xf]
        %v571 = vld [vmem:[#allocation7 + $0x4] sm:$0xf]
        %v572 = vld [vmem:[#allocation7 + $0x8] sm:$0xf]
        %v573 = vld [vmem:[#allocation7 + $0xc] sm:$0xf]
        %v574 = vld [vmem:[#allocation7 + $0x10] sm:$0xf]
        %v575 = vld [vmem:[#allocation7 + $0x14] sm:$0xf]
        %v576 = vld [vmem:[#allocation7 + $0x18] sm:$0xf]
        %v577 = vld [vmem:[#allocation7 + $0x1c] sm:$0xf]
        %v578 = vld [vmem:[#allocation7 + $0x20] sm:$0xf]
        %v579 = vld [vmem:[#allocation7 + $0x24] sm:$0xf]
        %v580 = vld [vmem:[#allocation7 + $0x28] sm:$0xf]
        %v581 = vld [vmem:[#allocation7 + $0x2c] sm:$0xf]
        %v582 = vld [vmem:[#allocation7 + $0x30] sm:$0xf]
        %v583 = vld [vmem:[#allocation7 + $0x34] sm:$0xf]
        %v584 = vld [vmem:[#allocation7 + $0x38] sm:$0xf]
        %v585 = vld [vmem:[#allocation7 + $0x3c] sm:$0xf]
        %v586 = vld [vmem:[#allocation8] sm:$0x1]
        %v588 = vperm.slane %v586, 0
        %v606 = vunpack.c.l.b16 %v570
        %v607 = vunpack.c.l.b16 %v571
        %v608 = vunpack.c.l.b16 %v572
        %v609 = vunpack.c.l.b16 %v573
        %v610 = vunpack.c.l.b16 %v574
        %v611 = vunpack.c.l.b16 %v575
        %v612 = vunpack.c.l.b16 %v576
        %v613 = vunpack.c.l.b16 %v577
        %v614 = vunpack.c.l.b16 %v578
        %v615 = vunpack.c.l.b16 %v579
        %v616 = vunpack.c.l.b16 %v580
        %v617 = vunpack.c.l.b16 %v581
        %v618 = vunpack.c.l.b16 %v582
        %v619 = vunpack.c.l.b16 %v583
        %v620 = vunpack.c.l.b16 %v584
        %v621 = vunpack.c.l.b16 %v585
        %v622 = vpack.c.b16 %v607, %v606
        %v623 = vpack.c.b16 %v609, %v608
        %v624 = vpack.c.b16 %v611, %v610
        %v625 = vpack.c.b16 %v613, %v612
        %v626 = vpack.c.b16 %v615, %v614
        %v627 = vpack.c.b16 %v617, %v616
        %v628 = vpack.c.b16 %v619, %v618
        %v629 = vpack.c.b16 %v621, %v620
        %638 = vmatpush.bf16.msra.mxu0 %v629
        %639 = vmatpush.bf16.msra.mxu0 %v628
        %640 = vmatpush.bf16.msra.mxu0 %v627
        %641 = vmatpush.bf16.msra.mxu0 %v626
        %642 = vmatpush.bf16.msra.mxu0 %v625
        %643 = vmatpush.bf16.msra.mxu0 %v624
        %644 = vmatpush.bf16.msra.mxu0 %v623
        %645 = vmatpush.bf16.msra.mxu0 %v622
        %646 = vmatmul.bf16.gmra.mxu0 %v562
        %v647 = vpop.f32.mrf.mxu0
        %v648 = vadd.f32 %v588, %v647
        %v649 = vpop.f32.mrf.mxu0
        %v650 = vadd.f32 %v588, %v649
        %651 = vmatmul.bf16.gmra.mxu0 %v563
        %v652 = vpop.f32.mrf.mxu0
        %v653 = vadd.f32 %v588, %v652
        %v654 = vpop.f32.mrf.mxu0
        %v655 = vadd.f32 %v588, %v654
        %656 = vmatmul.bf16.gmra.mxu0 %v564
        %v657 = vpop.f32.mrf.mxu0
        %v658 = vadd.f32 %v588, %v657
        %v659 = vpop.f32.mrf.mxu0
        %v660 = vadd.f32 %v588, %v659
        %661 = vmatmul.bf16.gmra.mxu0 %v565
        %v662 = vpop.f32.mrf.mxu0
        %v663 = vadd.f32 %v588, %v662
        %v664 = vpop.f32.mrf.mxu0
        %v665 = vadd.f32 %v588, %v664
        %666 = vmatmul.bf16.gmra.mxu0 %v566
        %v667 = vpop.f32.mrf.mxu0
        %v668 = vadd.f32 %v588, %v667
        %v669 = vpop.f32.mrf.mxu0
        %v670 = vadd.f32 %v588, %v669
        %671 = vmatmul.bf16.gmra.mxu0 %v567
        %v672 = vpop.f32.mrf.mxu0
        %v673 = vadd.f32 %v588, %v672
        %v674 = vpop.f32.mrf.mxu0
        %v675 = vadd.f32 %v588, %v674
        %676 = vmatmul.bf16.gmra.mxu0 %v568
        %v677 = vpop.f32.mrf.mxu0
        %v678 = vadd.f32 %v588, %v677
        %v679 = vpop.f32.mrf.mxu0
        %v680 = vadd.f32 %v588, %v679
        %681 = vmatmul.bf16.gmra.mxu0 %v569
        %v682 = vpop.f32.mrf.mxu0
        %v683 = vadd.f32 %v588, %v682
        %v684 = vpop.f32.mrf.mxu0
        %v685 = vadd.f32 %v588, %v684
        %686 = vdwg.mxu0
        %v687 = vmax.f32 %v648, 0.0
        %v688 = vmax.f32 %v650, 0.0
        %v689 = vmax.f32 %v653, 0.0
        %v690 = vmax.f32 %v655, 0.0
        %v691 = vmax.f32 %v658, 0.0
        %v692 = vmax.f32 %v660, 0.0
        %v693 = vmax.f32 %v663, 0.0
        %v694 = vmax.f32 %v665, 0.0
        %v695 = vmax.f32 %v668, 0.0
        %v696 = vmax.f32 %v670, 0.0
        %v697 = vmax.f32 %v673, 0.0
        %v698 = vmax.f32 %v675, 0.0
        %v699 = vmax.f32 %v678, 0.0
        %v700 = vmax.f32 %v680, 0.0
        %v701 = vmax.f32 %v683, 0.0
        %v702 = vmax.f32 %v685, 0.0
        %v703 = vpack.c.bf16 %v688, %v687
        %v704 = vpack.c.bf16 %v690, %v689
        %v705 = vpack.c.bf16 %v692, %v691
        %v706 = vpack.c.bf16 %v694, %v693
        %v707 = vpack.c.bf16 %v696, %v695
        %v708 = vpack.c.bf16 %v698, %v697
        %v709 = vpack.c.bf16 %v700, %v699
        %v710 = vpack.c.bf16 %v702, %v701
        %v711 = vld [vmem:[#allocation10] sm:$0xff]
        %v712 = vld [vmem:[#allocation10 + $0x8] sm:$0xff]
        %v713 = vld [vmem:[#allocation10 + $0x10] sm:$0xff]
        %v714 = vld [vmem:[#allocation10 + $0x18] sm:$0xff]
        %v715 = vld [vmem:[#allocation10 + $0x20] sm:$0xff]
        %v716 = vld [vmem:[#allocation10 + $0x28] sm:$0xff]
        %v717 = vld [vmem:[#allocation10 + $0x30] sm:$0xff]
        %v718 = vld [vmem:[#allocation10 + $0x38] sm:$0xff]
        %v719 = vld [vmem:[#allocation10 + $0x40] sm:$0xff]
        %v720 = vld [vmem:[#allocation10 + $0x48] sm:$0xff]
        %v721 = vld [vmem:[#allocation10 + $0x50] sm:$0xff]
        %v722 = vld [vmem:[#allocation10 + $0x58] sm:$0xff]
        %v723 = vld [vmem:[#allocation10 + $0x60] sm:$0xff]
        %v724 = vld [vmem:[#allocation10 + $0x68] sm:$0xff]
        %v725 = vld [vmem:[#allocation10 + $0x70] sm:$0xff]
        %v726 = vld [vmem:[#allocation10 + $0x78] sm:$0xff]
        %v727 = vld [vmem:[%s6] sm:$0x3]
        %v729 = vperm.slane %v727, 0
        %v730 = vperm.slane %v727, 1
        %v749 = vunpack.c.l.b16 %v711
        %v750 = vunpack.c.h.b16 %v711
        %v751 = vunpack.c.l.b16 %v712
        %v752 = vunpack.c.h.b16 %v712
        %v753 = vunpack.c.l.b16 %v713
        %v754 = vunpack.c.h.b16 %v713
        %v755 = vunpack.c.l.b16 %v714
        %v756 = vunpack.c.h.b16 %v714
        %v757 = vunpack.c.l.b16 %v715
        %v758 = vunpack.c.h.b16 %v715
        %v759 = vunpack.c.l.b16 %v716
        %v760 = vunpack.c.h.b16 %v716
        %v761 = vunpack.c.l.b16 %v717
        %v762 = vunpack.c.h.b16 %v717
        %v763 = vunpack.c.l.b16 %v718
        %v764 = vunpack.c.h.b16 %v718
        %v765 = vunpack.c.l.b16 %v719
        %v766 = vunpack.c.h.b16 %v719
        %v767 = vunpack.c.l.b16 %v720
        %v768 = vunpack.c.h.b16 %v720
        %v769 = vunpack.c.l.b16 %v721
        %v770 = vunpack.c.h.b16 %v721
        %v771 = vunpack.c.l.b16 %v722
        %v772 = vunpack.c.h.b16 %v722
        %v773 = vunpack.c.l.b16 %v723
        %v774 = vunpack.c.h.b16 %v723
        %v775 = vunpack.c.l.b16 %v724
        %v776 = vunpack.c.h.b16 %v724
        %v777 = vunpack.c.l.b16 %v725
        %v778 = vunpack.c.h.b16 %v725
        %v779 = vunpack.c.l.b16 %v726
        %v780 = vunpack.c.h.b16 %v726
        %v781 = vpack.c.b16 %v751, %v749
        %v782 = vpack.c.b16 %v752, %v750
        %v783 = vpack.c.b16 %v755, %v753
        %v784 = vpack.c.b16 %v756, %v754
        %v785 = vpack.c.b16 %v759, %v757
        %v786 = vpack.c.b16 %v760, %v758
        %v787 = vpack.c.b16 %v763, %v761
        %v788 = vpack.c.b16 %v764, %v762
        %v789 = vpack.c.b16 %v767, %v765
        %v790 = vpack.c.b16 %v768, %v766
        %v791 = vpack.c.b16 %v771, %v769
        %v792 = vpack.c.b16 %v772, %v770
        %v793 = vpack.c.b16 %v775, %v773
        %v794 = vpack.c.b16 %v776, %v774
        %v795 = vpack.c.b16 %v779, %v777
        %v796 = vpack.c.b16 %v780, %v778
        %813 = vmatpush.bf16.msra.mxu0 %v795
        %814 = vmatpush.bf16.msra.mxu0 %v793
        %815 = vmatpush.bf16.msra.mxu0 %v791
        %816 = vmatpush.bf16.msra.mxu0 %v789
        %817 = vmatpush.bf16.msra.mxu0 %v787
        %818 = vmatpush.bf16.msra.mxu0 %v785
        %819 = vmatpush.bf16.msra.mxu0 %v783
        %820 = vmatpush.bf16.msra.mxu0 %v781
        %821 = vmatmul.bf16.gmra.mxu0 %v703
        %v822 = vpop.f32.mrf.mxu0
        %v823 = vadd.f32 %v729, %v822
        %v824 = vpop.f32.mrf.mxu0
        %v825 = vadd.f32 %v729, %v824
        %826 = vmatmul.bf16.gmra.mxu0 %v704
        %v827 = vpop.f32.mrf.mxu0
        %v828 = vadd.f32 %v729, %v827
        %v829 = vpop.f32.mrf.mxu0
        %v830 = vadd.f32 %v729, %v829
        %831 = vmatmul.bf16.gmra.mxu0 %v705
        %v832 = vpop.f32.mrf.mxu0
        %v833 = vadd.f32 %v729, %v832
        %v834 = vpop.f32.mrf.mxu0
        %v835 = vadd.f32 %v729, %v834
        %836 = vmatmul.bf16.gmra.mxu0 %v706
        %v837 = vpop.f32.mrf.mxu0
        %v838 = vadd.f32 %v729, %v837
        %v839 = vpop.f32.mrf.mxu0
        %v840 = vadd.f32 %v729, %v839
        %841 = vmatmul.bf16.gmra.mxu0 %v707
        %v842 = vpop.f32.mrf.mxu0
        %v843 = vadd.f32 %v729, %v842
        %v844 = vpop.f32.mrf.mxu0
        %v845 = vadd.f32 %v729, %v844
        %846 = vmatmul.bf16.gmra.mxu0 %v708
        %v847 = vpop.f32.mrf.mxu0
        %v848 = vadd.f32 %v729, %v847
        %v849 = vpop.f32.mrf.mxu0
        %v850 = vadd.f32 %v729, %v849
        %851 = vmatmul.bf16.gmra.mxu0 %v709
        %v852 = vpop.f32.mrf.mxu0
        %v853 = vadd.f32 %v729, %v852
        %v854 = vpop.f32.mrf.mxu0
        %v855 = vadd.f32 %v729, %v854
        %856 = vmatmul.bf16.gmra.mxu0 %v710
        %v857 = vpop.f32.mrf.mxu0
        %v858 = vadd.f32 %v729, %v857
        %v859 = vpop.f32.mrf.mxu0
        %v860 = vadd.f32 %v729, %v859
        %861 = vdwg.mxu0
        %862 = vmatpush.bf16.msra.mxu0 %v796
        %863 = vmatpush.bf16.msra.mxu0 %v794
        %864 = vmatpush.bf16.msra.mxu0 %v792
        %865 = vmatpush.bf16.msra.mxu0 %v790
        %866 = vmatpush.bf16.msra.mxu0 %v788
        %867 = vmatpush.bf16.msra.mxu0 %v786
        %868 = vmatpush.bf16.msra.mxu0 %v784
        %869 = vmatpush.bf16.msra.mxu0 %v782
        %870 = vmatmul.bf16.gmra.mxu0 %v703
        %v871 = vpop.f32.mrf.mxu0
        %v872 = vadd.f32 %v730, %v871
        %v873 = vpop.f32.mrf.mxu0
        %v874 = vadd.f32 %v730, %v873
        %875 = vmatmul.bf16.gmra.mxu0 %v704
        %v876 = vpop.f32.mrf.mxu0
        %v877 = vadd.f32 %v730, %v876
        %v878 = vpop.f32.mrf.mxu0
        %v879 = vadd.f32 %v730, %v878
        %880 = vmatmul.bf16.gmra.mxu0 %v705
        %v881 = vpop.f32.mrf.mxu0
        %v882 = vadd.f32 %v730, %v881
        %v883 = vpop.f32.mrf.mxu0
        %v884 = vadd.f32 %v730, %v883
        %885 = vmatmul.bf16.gmra.mxu0 %v706
        %v886 = vpop.f32.mrf.mxu0
        %v887 = vadd.f32 %v730, %v886
        %v888 = vpop.f32.mrf.mxu0
        %v889 = vadd.f32 %v730, %v888
        %890 = vmatmul.bf16.gmra.mxu0 %v707
        %v891 = vpop.f32.mrf.mxu0
        %v892 = vadd.f32 %v730, %v891
        %v893 = vpop.f32.mrf.mxu0
        %v894 = vadd.f32 %v730, %v893
        %895 = vmatmul.bf16.gmra.mxu0 %v708
        %v896 = vpop.f32.mrf.mxu0
        %v897 = vadd.f32 %v730, %v896
        %v898 = vpop.f32.mrf.mxu0
        %v899 = vadd.f32 %v730, %v898
        %900 = vmatmul.bf16.gmra.mxu0 %v709
        %v901 = vpop.f32.mrf.mxu0
        %v902 = vadd.f32 %v730, %v901
        %v903 = vpop.f32.mrf.mxu0
        %v904 = vadd.f32 %v730, %v903
        %905 = vmatmul.bf16.gmra.mxu0 %v710
        %v906 = vpop.f32.mrf.mxu0
        %v907 = vadd.f32 %v730, %v906
        %v908 = vpop.f32.mrf.mxu0
        %v909 = vadd.f32 %v730, %v908
        %910 = vdwg.mxu0
        %v911 = vmax.f32 %v823, 0.0
        %v912 = vmax.f32 %v872, 0.0
        %v913 = vmax.f32 %v825, 0.0
        %v914 = vmax.f32 %v874, 0.0
        %v915 = vmax.f32 %v828, 0.0
        %v916 = vmax.f32 %v877, 0.0
        %v917 = vmax.f32 %v830, 0.0
        %v918 = vmax.f32 %v879, 0.0
        %v919 = vmax.f32 %v833, 0.0
        %v920 = vmax.f32 %v882, 0.0
        %v921 = vmax.f32 %v835, 0.0
        %v922 = vmax.f32 %v884, 0.0
        %v923 = vmax.f32 %v838, 0.0
        %v924 = vmax.f32 %v887, 0.0
        %v925 = vmax.f32 %v840, 0.0
        %v926 = vmax.f32 %v889, 0.0
        %v927 = vmax.f32 %v843, 0.0
        %v928 = vmax.f32 %v892, 0.0
        %v929 = vmax.f32 %v845, 0.0
        %v930 = vmax.f32 %v894, 0.0
        %v931 = vmax.f32 %v848, 0.0
        %v932 = vmax.f32 %v897, 0.0
        %v933 = vmax.f32 %v850, 0.0
        %v934 = vmax.f32 %v899, 0.0
        %v935 = vmax.f32 %v853, 0.0
        %v936 = vmax.f32 %v902, 0.0
        %v937 = vmax.f32 %v855, 0.0
        %v938 = vmax.f32 %v904, 0.0
        %v939 = vmax.f32 %v858, 0.0
        %v940 = vmax.f32 %v907, 0.0
        %v941 = vmax.f32 %v860, 0.0
        %v942 = vmax.f32 %v909, 0.0
        %s943 = smul.u32 0, 2
        %s944 = smul.addr %s943, 8
        %s945 = scalar_lea.vmem %s362, %s944 [#allocation11]
        %946 = vst [vmem:[%s945] sm:$0xff] %v911
        %947 = vst [vmem:[%s945 + $0x8] sm:$0xff] %v912
        %948 = vst [vmem:[%s945 + $0x10] sm:$0xff] %v913
        %949 = vst [vmem:[%s945 + $0x18] sm:$0xff] %v914
        %950 = vst [vmem:[%s945 + $0x20] sm:$0xff] %v915
        %951 = vst [vmem:[%s945 + $0x28] sm:$0xff] %v916
        %952 = vst [vmem:[%s945 + $0x30] sm:$0xff] %v917
        %953 = vst [vmem:[%s945 + $0x38] sm:$0xff] %v918
        %954 = vst [vmem:[%s945 + $0x40] sm:$0xff] %v919
        %955 = vst [vmem:[%s945 + $0x48] sm:$0xff] %v920
        %956 = vst [vmem:[%s945 + $0x50] sm:$0xff] %v921
        %957 = vst [vmem:[%s945 + $0x58] sm:$0xff] %v922
        %958 = vst [vmem:[%s945 + $0x60] sm:$0xff] %v923
        %959 = vst [vmem:[%s945 + $0x68] sm:$0xff] %v924
        %960 = vst [vmem:[%s945 + $0x70] sm:$0xff] %v925
        %961 = vst [vmem:[%s945 + $0x78] sm:$0xff] %v926
        %962 = vst [vmem:[%s945 + $0x80] sm:$0xff] %v927
        %963 = vst [vmem:[%s945 + $0x88] sm:$0xff] %v928
        %964 = vst [vmem:[%s945 + $0x90] sm:$0xff] %v929
        %965 = vst [vmem:[%s945 + $0x98] sm:$0xff] %v930
        %966 = vst [vmem:[%s945 + $0xa0] sm:$0xff] %v931
        %967 = vst [vmem:[%s945 + $0xa8] sm:$0xff] %v932
        %968 = vst [vmem:[%s945 + $0xb0] sm:$0xff] %v933
        %969 = vst [vmem:[%s945 + $0xb8] sm:$0xff] %v934
        %970 = vst [vmem:[%s945 + $0xc0] sm:$0xff] %v935
        %971 = vst [vmem:[%s945 + $0xc8] sm:$0xff] %v936
        %972 = vst [vmem:[%s945 + $0xd0] sm:$0xff] %v937
        %973 = vst [vmem:[%s945 + $0xd8] sm:$0xff] %v938
        %974 = vst [vmem:[%s945 + $0xe0] sm:$0xff] %v939
        %975 = vst [vmem:[%s945 + $0xe8] sm:$0xff] %v940
        %976 = vst [vmem:[%s945 + $0xf0] sm:$0xff] %v941
        %977 = vst [vmem:[%s945 + $0xf8] sm:$0xff] %v942
        %s978 = scalar_lea.vmem %s311, 64 [#allocation2]
        %v979 = vld [vmem:[%s978] sm:$0xf]
        %v980 = vld [vmem:[%s978 + $0x4] sm:$0xf]
        %v981 = vld [vmem:[%s978 + $0x8] sm:$0xf]
        %v982 = vld [vmem:[%s978 + $0xc] sm:$0xf]
        %v983 = vld [vmem:[%s978 + $0x10] sm:$0xf]
        %v984 = vld [vmem:[%s978 + $0x14] sm:$0xf]
        %v985 = vld [vmem:[%s978 + $0x18] sm:$0xf]
        %v986 = vld [vmem:[%s978 + $0x1c] sm:$0xf]
        %v987 = vld [vmem:[%s978 + $0x20] sm:$0xf]
        %v988 = vld [vmem:[%s978 + $0x24] sm:$0xf]
        %v989 = vld [vmem:[%s978 + $0x28] sm:$0xf]
        %v990 = vld [vmem:[%s978 + $0x2c] sm:$0xf]
        %v991 = vld [vmem:[%s978 + $0x30] sm:$0xf]
        %v992 = vld [vmem:[%s978 + $0x34] sm:$0xf]
        %v993 = vld [vmem:[%s978 + $0x38] sm:$0xf]
        %v994 = vld [vmem:[%s978 + $0x3c] sm:$0xf]
        %v995 = vld [vmem:[#allocation5] sm:$0xf]
        %v996 = vld [vmem:[#allocation5 + $0x4] sm:$0xf]
        %v997 = vld [vmem:[#allocation5 + $0x8] sm:$0xf]
        %v998 = vld [vmem:[#allocation5 + $0xc] sm:$0xf]
        %v999 = vld [vmem:[#allocation5 + $0x10] sm:$0xf]
        %v1000 = vld [vmem:[#allocation5 + $0x14] sm:$0xf]
        %v1001 = vld [vmem:[#allocation5 + $0x18] sm:$0xf]
        %v1002 = vld [vmem:[#allocation5 + $0x1c] sm:$0xf]
        %v1003 = vld [vmem:[#allocation5 + $0x20] sm:$0xf]
        %v1004 = vld [vmem:[#allocation5 + $0x24] sm:$0xf]
        %v1005 = vld [vmem:[#allocation5 + $0x28] sm:$0xf]
        %v1006 = vld [vmem:[#allocation5 + $0x2c] sm:$0xf]
        %v1007 = vld [vmem:[#allocation5 + $0x30] sm:$0xf]
        %v1008 = vld [vmem:[#allocation5 + $0x34] sm:$0xf]
        %v1009 = vld [vmem:[#allocation5 + $0x38] sm:$0xf]
        %v1010 = vld [vmem:[#allocation5 + $0x3c] sm:$0xf]
        %v1011 = vld [vmem:[%s2] sm:$0x1]
        %v1013 = vperm.slane %v1011, 0
        %v1031 = vunpack.c.l.b16 %v979
        %v1032 = vunpack.c.l.b16 %v980
        %v1033 = vunpack.c.l.b16 %v981
        %v1034 = vunpack.c.l.b16 %v982
        %v1035 = vunpack.c.l.b16 %v983
        %v1036 = vunpack.c.l.b16 %v984
        %v1037 = vunpack.c.l.b16 %v985
        %v1038 = vunpack.c.l.b16 %v986
        %v1039 = vunpack.c.l.b16 %v987
        %v1040 = vunpack.c.l.b16 %v988
        %v1041 = vunpack.c.l.b16 %v989
        %v1042 = vunpack.c.l.b16 %v990
        %v1043 = vunpack.c.l.b16 %v991
        %v1044 = vunpack.c.l.b16 %v992
        %v1045 = vunpack.c.l.b16 %v993
        %v1046 = vunpack.c.l.b16 %v994
        %v1047 = vpack.c.b16 %v1032, %v1031
        %v1048 = vpack.c.b16 %v1034, %v1033
        %v1049 = vpack.c.b16 %v1036, %v1035
        %v1050 = vpack.c.b16 %v1038, %v1037
        %v1051 = vpack.c.b16 %v1040, %v1039
        %v1052 = vpack.c.b16 %v1042, %v1041
        %v1053 = vpack.c.b16 %v1044, %v1043
        %v1054 = vpack.c.b16 %v1046, %v1045
        %v1079 = vunpack.c.l.b16 %v995
        %v1080 = vunpack.c.l.b16 %v996
        %v1081 = vunpack.c.l.b16 %v997
        %v1082 = vunpack.c.l.b16 %v998
        %v1083 = vunpack.c.l.b16 %v999
        %v1084 = vunpack.c.l.b16 %v1000
        %v1085 = vunpack.c.l.b16 %v1001
        %v1086 = vunpack.c.l.b16 %v1002
        %v1087 = vunpack.c.l.b16 %v1003
        %v1088 = vunpack.c.l.b16 %v1004
        %v1089 = vunpack.c.l.b16 %v1005
        %v1090 = vunpack.c.l.b16 %v1006
        %v1091 = vunpack.c.l.b16 %v1007
        %v1092 = vunpack.c.l.b16 %v1008
        %v1093 = vunpack.c.l.b16 %v1009
        %v1094 = vunpack.c.l.b16 %v1010
        %v1095 = vpack.c.b16 %v1080, %v1079
        %v1096 = vpack.c.b16 %v1082, %v1081
        %v1097 = vpack.c.b16 %v1084, %v1083
        %v1098 = vpack.c.b16 %v1086, %v1085
        %v1099 = vpack.c.b16 %v1088, %v1087
        %v1100 = vpack.c.b16 %v1090, %v1089
        %v1101 = vpack.c.b16 %v1092, %v1091
        %v1102 = vpack.c.b16 %v1094, %v1093
        %1111 = vmatpush.bf16.msra.mxu0 %v1102
        %1112 = vmatpush.bf16.msra.mxu0 %v1101
        %1113 = vmatpush.bf16.msra.mxu0 %v1100
        %1114 = vmatpush.bf16.msra.mxu0 %v1099
        %1115 = vmatpush.bf16.msra.mxu0 %v1098
        %1116 = vmatpush.bf16.msra.mxu0 %v1097
        %1117 = vmatpush.bf16.msra.mxu0 %v1096
        %1118 = vmatpush.bf16.msra.mxu0 %v1095
        %1119 = vmatmul.bf16.gmra.mxu0 %v1047
        %v1120 = vpop.f32.mrf.mxu0
        %v1121 = vadd.f32 %v1013, %v1120
        %v1122 = vpop.f32.mrf.mxu0
        %v1123 = vadd.f32 %v1013, %v1122
        %1124 = vmatmul.bf16.gmra.mxu0 %v1048
        %v1125 = vpop.f32.mrf.mxu0
        %v1126 = vadd.f32 %v1013, %v1125
        %v1127 = vpop.f32.mrf.mxu0
        %v1128 = vadd.f32 %v1013, %v1127
        %1129 = vmatmul.bf16.gmra.mxu0 %v1049
        %v1130 = vpop.f32.mrf.mxu0
        %v1131 = vadd.f32 %v1013, %v1130
        %v1132 = vpop.f32.mrf.mxu0
        %v1133 = vadd.f32 %v1013, %v1132
        %1134 = vmatmul.bf16.gmra.mxu0 %v1050
        %v1135 = vpop.f32.mrf.mxu0
        %v1136 = vadd.f32 %v1013, %v1135
        %v1137 = vpop.f32.mrf.mxu0
        %v1138 = vadd.f32 %v1013, %v1137
        %1139 = vmatmul.bf16.gmra.mxu0 %v1051
        %v1140 = vpop.f32.mrf.mxu0
        %v1141 = vadd.f32 %v1013, %v1140
        %v1142 = vpop.f32.mrf.mxu0
        %v1143 = vadd.f32 %v1013, %v1142
        %1144 = vmatmul.bf16.gmra.mxu0 %v1052
        %v1145 = vpop.f32.mrf.mxu0
        %v1146 = vadd.f32 %v1013, %v1145
        %v1147 = vpop.f32.mrf.mxu0
        %v1148 = vadd.f32 %v1013, %v1147
        %1149 = vmatmul.bf16.gmra.mxu0 %v1053
        %v1150 = vpop.f32.mrf.mxu0
        %v1151 = vadd.f32 %v1013, %v1150
        %v1152 = vpop.f32.mrf.mxu0
        %v1153 = vadd.f32 %v1013, %v1152
        %1154 = vmatmul.bf16.gmra.mxu0 %v1054
        %v1155 = vpop.f32.mrf.mxu0
        %v1156 = vadd.f32 %v1013, %v1155
        %v1157 = vpop.f32.mrf.mxu0
        %v1158 = vadd.f32 %v1013, %v1157
        %1159 = vdwg.mxu0
        %v1160 = vmax.f32 %v1121, 0.0
        %v1161 = vmax.f32 %v1123, 0.0
        %v1162 = vmax.f32 %v1126, 0.0
        %v1163 = vmax.f32 %v1128, 0.0
        %v1164 = vmax.f32 %v1131, 0.0
        %v1165 = vmax.f32 %v1133, 0.0
        %v1166 = vmax.f32 %v1136, 0.0
        %v1167 = vmax.f32 %v1138, 0.0
        %v1168 = vmax.f32 %v1141, 0.0
        %v1169 = vmax.f32 %v1143, 0.0
        %v1170 = vmax.f32 %v1146, 0.0
        %v1171 = vmax.f32 %v1148, 0.0
        %v1172 = vmax.f32 %v1151, 0.0
        %v1173 = vmax.f32 %v1153, 0.0
        %v1174 = vmax.f32 %v1156, 0.0
        %v1175 = vmax.f32 %v1158, 0.0
        %v1176 = vpack.c.bf16 %v1161, %v1160
        %v1177 = vpack.c.bf16 %v1163, %v1162
        %v1178 = vpack.c.bf16 %v1165, %v1164
        %v1179 = vpack.c.bf16 %v1167, %v1166
        %v1180 = vpack.c.bf16 %v1169, %v1168
        %v1181 = vpack.c.bf16 %v1171, %v1170
        %v1182 = vpack.c.bf16 %v1173, %v1172
        %v1183 = vpack.c.bf16 %v1175, %v1174
        %v1184 = vld [vmem:[#allocation7] sm:$0xf]
        %v1185 = vld [vmem:[#allocation7 + $0x4] sm:$0xf]
        %v1186 = vld [vmem:[#allocation7 + $0x8] sm:$0xf]
        %v1187 = vld [vmem:[#allocation7 + $0xc] sm:$0xf]
        %v1188 = vld [vmem:[#allocation7 + $0x10] sm:$0xf]
        %v1189 = vld [vmem:[#allocation7 + $0x14] sm:$0xf]
        %v1190 = vld [vmem:[#allocation7 + $0x18] sm:$0xf]
        %v1191 = vld [vmem:[#allocation7 + $0x1c] sm:$0xf]
        %v1192 = vld [vmem:[#allocation7 + $0x20] sm:$0xf]
        %v1193 = vld [vmem:[#allocation7 + $0x24] sm:$0xf]
        %v1194 = vld [vmem:[#allocation7 + $0x28] sm:$0xf]
        %v1195 = vld [vmem:[#allocation7 + $0x2c] sm:$0xf]
        %v1196 = vld [vmem:[#allocation7 + $0x30] sm:$0xf]
        %v1197 = vld [vmem:[#allocation7 + $0x34] sm:$0xf]
        %v1198 = vld [vmem:[#allocation7 + $0x38] sm:$0xf]
        %v1199 = vld [vmem:[#allocation7 + $0x3c] sm:$0xf]
        %v1200 = vld [vmem:[#allocation8] sm:$0x1]
        %v1202 = vperm.slane %v1200, 0
        %v1220 = vunpack.c.l.b16 %v1184
        %v1221 = vunpack.c.l.b16 %v1185
        %v1222 = vunpack.c.l.b16 %v1186
        %v1223 = vunpack.c.l.b16 %v1187
        %v1224 = vunpack.c.l.b16 %v1188
        %v1225 = vunpack.c.l.b16 %v1189
        %v1226 = vunpack.c.l.b16 %v1190
        %v1227 = vunpack.c.l.b16 %v1191
        %v1228 = vunpack.c.l.b16 %v1192
        %v1229 = vunpack.c.l.b16 %v1193
        %v1230 = vunpack.c.l.b16 %v1194
        %v1231 = vunpack.c.l.b16 %v1195
        %v1232 = vunpack.c.l.b16 %v1196
        %v1233 = vunpack.c.l.b16 %v1197
        %v1234 = vunpack.c.l.b16 %v1198
        %v1235 = vunpack.c.l.b16 %v1199
        %v1236 = vpack.c.b16 %v1221, %v1220
        %v1237 = vpack.c.b16 %v1223, %v1222
        %v1238 = vpack.c.b16 %v1225, %v1224
        %v1239 = vpack.c.b16 %v1227, %v1226
        %v1240 = vpack.c.b16 %v1229, %v1228
        %v1241 = vpack.c.b16 %v1231, %v1230
        %v1242 = vpack.c.b16 %v1233, %v1232
        %v1243 = vpack.c.b16 %v1235, %v1234
        %1252 = vmatpush.bf16.msra.mxu0 %v1243
        %1253 = vmatpush.bf16.msra.mxu0 %v1242
        %1254 = vmatpush.bf16.msra.mxu0 %v1241
        %1255 = vmatpush.bf16.msra.mxu0 %v1240
        %1256 = vmatpush.bf16.msra.mxu0 %v1239
        %1257 = vmatpush.bf16.msra.mxu0 %v1238
        %1258 = vmatpush.bf16.msra.mxu0 %v1237
        %1259 = vmatpush.bf16.msra.mxu0 %v1236
        %1260 = vmatmul.bf16.gmra.mxu0 %v1176
        %v1261 = vpop.f32.mrf.mxu0
        %v1262 = vadd.f32 %v1202, %v1261
        %v1263 = vpop.f32.mrf.mxu0
        %v1264 = vadd.f32 %v1202, %v1263
        %1265 = vmatmul.bf16.gmra.mxu0 %v1177
        %v1266 = vpop.f32.mrf.mxu0
        %v1267 = vadd.f32 %v1202, %v1266
        %v1268 = vpop.f32.mrf.mxu0
        %v1269 = vadd.f32 %v1202, %v1268
        %1270 = vmatmul.bf16.gmra.mxu0 %v1178
        %v1271 = vpop.f32.mrf.mxu0
        %v1272 = vadd.f32 %v1202, %v1271
        %v1273 = vpop.f32.mrf.mxu0
        %v1274 = vadd.f32 %v1202, %v1273
        %1275 = vmatmul.bf16.gmra.mxu0 %v1179
        %v1276 = vpop.f32.mrf.mxu0
        %v1277 = vadd.f32 %v1202, %v1276
        %v1278 = vpop.f32.mrf.mxu0
        %v1279 = vadd.f32 %v1202, %v1278
        %1280 = vmatmul.bf16.gmra.mxu0 %v1180
        %v1281 = vpop.f32.mrf.mxu0
        %v1282 = vadd.f32 %v1202, %v1281
        %v1283 = vpop.f32.mrf.mxu0
        %v1284 = vadd.f32 %v1202, %v1283
        %1285 = vmatmul.bf16.gmra.mxu0 %v1181
        %v1286 = vpop.f32.mrf.mxu0
        %v1287 = vadd.f32 %v1202, %v1286
        %v1288 = vpop.f32.mrf.mxu0
        %v1289 = vadd.f32 %v1202, %v1288
        %1290 = vmatmul.bf16.gmra.mxu0 %v1182
        %v1291 = vpop.f32.mrf.mxu0
        %v1292 = vadd.f32 %v1202, %v1291
        %v1293 = vpop.f32.mrf.mxu0
        %v1294 = vadd.f32 %v1202, %v1293
        %1295 = vmatmul.bf16.gmra.mxu0 %v1183
        %v1296 = vpop.f32.mrf.mxu0
        %v1297 = vadd.f32 %v1202, %v1296
        %v1298 = vpop.f32.mrf.mxu0
        %v1299 = vadd.f32 %v1202, %v1298
        %1300 = vdwg.mxu0
        %v1301 = vmax.f32 %v1262, 0.0
        %v1302 = vmax.f32 %v1264, 0.0
        %v1303 = vmax.f32 %v1267, 0.0
        %v1304 = vmax.f32 %v1269, 0.0
        %v1305 = vmax.f32 %v1272, 0.0
        %v1306 = vmax.f32 %v1274, 0.0
        %v1307 = vmax.f32 %v1277, 0.0
        %v1308 = vmax.f32 %v1279, 0.0
        %v1309 = vmax.f32 %v1282, 0.0
        %v1310 = vmax.f32 %v1284, 0.0
        %v1311 = vmax.f32 %v1287, 0.0
        %v1312 = vmax.f32 %v1289, 0.0
        %v1313 = vmax.f32 %v1292, 0.0
        %v1314 = vmax.f32 %v1294, 0.0
        %v1315 = vmax.f32 %v1297, 0.0
        %v1316 = vmax.f32 %v1299, 0.0
        %v1317 = vpack.c.bf16 %v1302, %v1301
        %v1318 = vpack.c.bf16 %v1304, %v1303
        %v1319 = vpack.c.bf16 %v1306, %v1305
        %v1320 = vpack.c.bf16 %v1308, %v1307
        %v1321 = vpack.c.bf16 %v1310, %v1309
        %v1322 = vpack.c.bf16 %v1312, %v1311
        %v1323 = vpack.c.bf16 %v1314, %v1313
        %v1324 = vpack.c.bf16 %v1316, %v1315
        %v1325 = vld [vmem:[#allocation10] sm:$0xff]
        %v1326 = vld [vmem:[#allocation10 + $0x8] sm:$0xff]
        %v1327 = vld [vmem:[#allocation10 + $0x10] sm:$0xff]
        %v1328 = vld [vmem:[#allocation10 + $0x18] sm:$0xff]
        %v1329 = vld [vmem:[#allocation10 + $0x20] sm:$0xff]
        %v1330 = vld [vmem:[#allocation10 + $0x28] sm:$0xff]
        %v1331 = vld [vmem:[#allocation10 + $0x30] sm:$0xff]
        %v1332 = vld [vmem:[#allocation10 + $0x38] sm:$0xff]
        %v1333 = vld [vmem:[#allocation10 + $0x40] sm:$0xff]
        %v1334 = vld [vmem:[#allocation10 + $0x48] sm:$0xff]
        %v1335 = vld [vmem:[#allocation10 + $0x50] sm:$0xff]
        %v1336 = vld [vmem:[#allocation10 + $0x58] sm:$0xff]
        %v1337 = vld [vmem:[#allocation10 + $0x60] sm:$0xff]
        %v1338 = vld [vmem:[#allocation10 + $0x68] sm:$0xff]
        %v1339 = vld [vmem:[#allocation10 + $0x70] sm:$0xff]
        %v1340 = vld [vmem:[#allocation10 + $0x78] sm:$0xff]
        %v1341 = vld [vmem:[%s6] sm:$0x3]
        %v1343 = vperm.slane %v1341, 0
        %v1344 = vperm.slane %v1341, 1
        %v1363 = vunpack.c.l.b16 %v1325
        %v1364 = vunpack.c.h.b16 %v1325
        %v1365 = vunpack.c.l.b16 %v1326
        %v1366 = vunpack.c.h.b16 %v1326
        %v1367 = vunpack.c.l.b16 %v1327
        %v1368 = vunpack.c.h.b16 %v1327
        %v1369 = vunpack.c.l.b16 %v1328
        %v1370 = vunpack.c.h.b16 %v1328
        %v1371 = vunpack.c.l.b16 %v1329
        %v1372 = vunpack.c.h.b16 %v1329
        %v1373 = vunpack.c.l.b16 %v1330
        %v1374 = vunpack.c.h.b16 %v1330
        %v1375 = vunpack.c.l.b16 %v1331
        %v1376 = vunpack.c.h.b16 %v1331
        %v1377 = vunpack.c.l.b16 %v1332
        %v1378 = vunpack.c.h.b16 %v1332
        %v1379 = vunpack.c.l.b16 %v1333
        %v1380 = vunpack.c.h.b16 %v1333
        %v1381 = vunpack.c.l.b16 %v1334
        %v1382 = vunpack.c.h.b16 %v1334
        %v1383 = vunpack.c.l.b16 %v1335
        %v1384 = vunpack.c.h.b16 %v1335
        %v1385 = vunpack.c.l.b16 %v1336
        %v1386 = vunpack.c.h.b16 %v1336
        %v1387 = vunpack.c.l.b16 %v1337
        %v1388 = vunpack.c.h.b16 %v1337
        %v1389 = vunpack.c.l.b16 %v1338
        %v1390 = vunpack.c.h.b16 %v1338
        %v1391 = vunpack.c.l.b16 %v1339
        %v1392 = vunpack.c.h.b16 %v1339
        %v1393 = vunpack.c.l.b16 %v1340
        %v1394 = vunpack.c.h.b16 %v1340
        %v1395 = vpack.c.b16 %v1365, %v1363
        %v1396 = vpack.c.b16 %v1366, %v1364
        %v1397 = vpack.c.b16 %v1369, %v1367
        %v1398 = vpack.c.b16 %v1370, %v1368
        %v1399 = vpack.c.b16 %v1373, %v1371
        %v1400 = vpack.c.b16 %v1374, %v1372
        %v1401 = vpack.c.b16 %v1377, %v1375
        %v1402 = vpack.c.b16 %v1378, %v1376
        %v1403 = vpack.c.b16 %v1381, %v1379
        %v1404 = vpack.c.b16 %v1382, %v1380
        %v1405 = vpack.c.b16 %v1385, %v1383
        %v1406 = vpack.c.b16 %v1386, %v1384
        %v1407 = vpack.c.b16 %v1389, %v1387
        %v1408 = vpack.c.b16 %v1390, %v1388
        %v1409 = vpack.c.b16 %v1393, %v1391
        %v1410 = vpack.c.b16 %v1394, %v1392
        %1427 = vmatpush.bf16.msra.mxu0 %v1409
        %1428 = vmatpush.bf16.msra.mxu0 %v1407
        %1429 = vmatpush.bf16.msra.mxu0 %v1405
        %1430 = vmatpush.bf16.msra.mxu0 %v1403
        %1431 = vmatpush.bf16.msra.mxu0 %v1401
        %1432 = vmatpush.bf16.msra.mxu0 %v1399
        %1433 = vmatpush.bf16.msra.mxu0 %v1397
        %1434 = vmatpush.bf16.msra.mxu0 %v1395
        %1435 = vmatmul.bf16.gmra.mxu0 %v1317
        %v1436 = vpop.f32.mrf.mxu0
        %v1437 = vadd.f32 %v1343, %v1436
        %v1438 = vpop.f32.mrf.mxu0
        %v1439 = vadd.f32 %v1343, %v1438
        %1440 = vmatmul.bf16.gmra.mxu0 %v1318
        %v1441 = vpop.f32.mrf.mxu0
        %v1442 = vadd.f32 %v1343, %v1441
        %v1443 = vpop.f32.mrf.mxu0
        %v1444 = vadd.f32 %v1343, %v1443
        %1445 = vmatmul.bf16.gmra.mxu0 %v1319
        %v1446 = vpop.f32.mrf.mxu0
        %v1447 = vadd.f32 %v1343, %v1446
        %v1448 = vpop.f32.mrf.mxu0
        %v1449 = vadd.f32 %v1343, %v1448
        %1450 = vmatmul.bf16.gmra.mxu0 %v1320
        %v1451 = vpop.f32.mrf.mxu0
        %v1452 = vadd.f32 %v1343, %v1451
        %v1453 = vpop.f32.mrf.mxu0
        %v1454 = vadd.f32 %v1343, %v1453
        %1455 = vmatmul.bf16.gmra.mxu0 %v1321
        %v1456 = vpop.f32.mrf.mxu0
        %v1457 = vadd.f32 %v1343, %v1456
        %v1458 = vpop.f32.mrf.mxu0
        %v1459 = vadd.f32 %v1343, %v1458
        %1460 = vmatmul.bf16.gmra.mxu0 %v1322
        %v1461 = vpop.f32.mrf.mxu0
        %v1462 = vadd.f32 %v1343, %v1461
        %v1463 = vpop.f32.mrf.mxu0
        %v1464 = vadd.f32 %v1343, %v1463
        %1465 = vmatmul.bf16.gmra.mxu0 %v1323
        %v1466 = vpop.f32.mrf.mxu0
        %v1467 = vadd.f32 %v1343, %v1466
        %v1468 = vpop.f32.mrf.mxu0
        %v1469 = vadd.f32 %v1343, %v1468
        %1470 = vmatmul.bf16.gmra.mxu0 %v1324
        %v1471 = vpop.f32.mrf.mxu0
        %v1472 = vadd.f32 %v1343, %v1471
        %v1473 = vpop.f32.mrf.mxu0
        %v1474 = vadd.f32 %v1343, %v1473
        %1475 = vdwg.mxu0
        %1476 = vmatpush.bf16.msra.mxu0 %v1410
        %1477 = vmatpush.bf16.msra.mxu0 %v1408
        %1478 = vmatpush.bf16.msra.mxu0 %v1406
        %1479 = vmatpush.bf16.msra.mxu0 %v1404
        %1480 = vmatpush.bf16.msra.mxu0 %v1402
        %1481 = vmatpush.bf16.msra.mxu0 %v1400
        %1482 = vmatpush.bf16.msra.mxu0 %v1398
        %1483 = vmatpush.bf16.msra.mxu0 %v1396
        %1484 = vmatmul.bf16.gmra.mxu0 %v1317
        %v1485 = vpop.f32.mrf.mxu0
        %v1486 = vadd.f32 %v1344, %v1485
        %v1487 = vpop.f32.mrf.mxu0
        %v1488 = vadd.f32 %v1344, %v1487
        %1489 = vmatmul.bf16.gmra.mxu0 %v1318
        %v1490 = vpop.f32.mrf.mxu0
        %v1491 = vadd.f32 %v1344, %v1490
        %v1492 = vpop.f32.mrf.mxu0
        %v1493 = vadd.f32 %v1344, %v1492
        %1494 = vmatmul.bf16.gmra.mxu0 %v1319
        %v1495 = vpop.f32.mrf.mxu0
        %v1496 = vadd.f32 %v1344, %v1495
        %v1497 = vpop.f32.mrf.mxu0
        %v1498 = vadd.f32 %v1344, %v1497
        %1499 = vmatmul.bf16.gmra.mxu0 %v1320
        %v1500 = vpop.f32.mrf.mxu0
        %v1501 = vadd.f32 %v1344, %v1500
        %v1502 = vpop.f32.mrf.mxu0
        %v1503 = vadd.f32 %v1344, %v1502
        %1504 = vmatmul.bf16.gmra.mxu0 %v1321
        %v1505 = vpop.f32.mrf.mxu0
        %v1506 = vadd.f32 %v1344, %v1505
        %v1507 = vpop.f32.mrf.mxu0
        %v1508 = vadd.f32 %v1344, %v1507
        %1509 = vmatmul.bf16.gmra.mxu0 %v1322
        %v1510 = vpop.f32.mrf.mxu0
        %v1511 = vadd.f32 %v1344, %v1510
        %v1512 = vpop.f32.mrf.mxu0
        %v1513 = vadd.f32 %v1344, %v1512
        %1514 = vmatmul.bf16.gmra.mxu0 %v1323
        %v1515 = vpop.f32.mrf.mxu0
        %v1516 = vadd.f32 %v1344, %v1515
        %v1517 = vpop.f32.mrf.mxu0
        %v1518 = vadd.f32 %v1344, %v1517
        %1519 = vmatmul.bf16.gmra.mxu0 %v1324
        %v1520 = vpop.f32.mrf.mxu0
        %v1521 = vadd.f32 %v1344, %v1520
        %v1522 = vpop.f32.mrf.mxu0
        %v1523 = vadd.f32 %v1344, %v1522
        %1524 = vdwg.mxu0
        %v1525 = vmax.f32 %v1437, 0.0
        %v1526 = vmax.f32 %v1486, 0.0
        %v1527 = vmax.f32 %v1439, 0.0
        %v1528 = vmax.f32 %v1488, 0.0
        %v1529 = vmax.f32 %v1442, 0.0
        %v1530 = vmax.f32 %v1491, 0.0
        %v1531 = vmax.f32 %v1444, 0.0
        %v1532 = vmax.f32 %v1493, 0.0
        %v1533 = vmax.f32 %v1447, 0.0
        %v1534 = vmax.f32 %v1496, 0.0
        %v1535 = vmax.f32 %v1449, 0.0
        %v1536 = vmax.f32 %v1498, 0.0
        %v1537 = vmax.f32 %v1452, 0.0
        %v1538 = vmax.f32 %v1501, 0.0
        %v1539 = vmax.f32 %v1454, 0.0
        %v1540 = vmax.f32 %v1503, 0.0
        %v1541 = vmax.f32 %v1457, 0.0
        %v1542 = vmax.f32 %v1506, 0.0
        %v1543 = vmax.f32 %v1459, 0.0
        %v1544 = vmax.f32 %v1508, 0.0
        %v1545 = vmax.f32 %v1462, 0.0
        %v1546 = vmax.f32 %v1511, 0.0
        %v1547 = vmax.f32 %v1464, 0.0
        %v1548 = vmax.f32 %v1513, 0.0
        %v1549 = vmax.f32 %v1467, 0.0
        %v1550 = vmax.f32 %v1516, 0.0
        %v1551 = vmax.f32 %v1469, 0.0
        %v1552 = vmax.f32 %v1518, 0.0
        %v1553 = vmax.f32 %v1472, 0.0
        %v1554 = vmax.f32 %v1521, 0.0
        %v1555 = vmax.f32 %v1474, 0.0
        %v1556 = vmax.f32 %v1523, 0.0
        %s1557 = smul.u32 16, 2
        %s1558 = smul.addr %s1557, 8
        %s1559 = scalar_lea.vmem %s362, %s1558 [#allocation11]
        %1560 = vst [vmem:[%s1559] sm:$0xff] %v1525
        %1561 = vst [vmem:[%s1559 + $0x8] sm:$0xff] %v1526
        %1562 = vst [vmem:[%s1559 + $0x10] sm:$0xff] %v1527
        %1563 = vst [vmem:[%s1559 + $0x18] sm:$0xff] %v1528
        %1564 = vst [vmem:[%s1559 + $0x20] sm:$0xff] %v1529
        %1565 = vst [vmem:[%s1559 + $0x28] sm:$0xff] %v1530
        %1566 = vst [vmem:[%s1559 + $0x30] sm:$0xff] %v1531
        %1567 = vst [vmem:[%s1559 + $0x38] sm:$0xff] %v1532
        %1568 = vst [vmem:[%s1559 + $0x40] sm:$0xff] %v1533
        %1569 = vst [vmem:[%s1559 + $0x48] sm:$0xff] %v1534
        %1570 = vst [vmem:[%s1559 + $0x50] sm:$0xff] %v1535
        %1571 = vst [vmem:[%s1559 + $0x58] sm:$0xff] %v1536
        %1572 = vst [vmem:[%s1559 + $0x60] sm:$0xff] %v1537
        %1573 = vst [vmem:[%s1559 + $0x68] sm:$0xff] %v1538
        %1574 = vst [vmem:[%s1559 + $0x70] sm:$0xff] %v1539
        %1575 = vst [vmem:[%s1559 + $0x78] sm:$0xff] %v1540
        %1576 = vst [vmem:[%s1559 + $0x80] sm:$0xff] %v1541
        %1577 = vst [vmem:[%s1559 + $0x88] sm:$0xff] %v1542
        %1578 = vst [vmem:[%s1559 + $0x90] sm:$0xff] %v1543
        %1579 = vst [vmem:[%s1559 + $0x98] sm:$0xff] %v1544
        %1580 = vst [vmem:[%s1559 + $0xa0] sm:$0xff] %v1545
        %1581 = vst [vmem:[%s1559 + $0xa8] sm:$0xff] %v1546
        %1582 = vst [vmem:[%s1559 + $0xb0] sm:$0xff] %v1547
        %1583 = vst [vmem:[%s1559 + $0xb8] sm:$0xff] %v1548
        %1584 = vst [vmem:[%s1559 + $0xc0] sm:$0xff] %v1549
        %1585 = vst [vmem:[%s1559 + $0xc8] sm:$0xff] %v1550
        %1586 = vst [vmem:[%s1559 + $0xd0] sm:$0xff] %v1551
        %1587 = vst [vmem:[%s1559 + $0xd8] sm:$0xff] %v1552
        %1588 = vst [vmem:[%s1559 + $0xe0] sm:$0xff] %v1553
        %1589 = vst [vmem:[%s1559 + $0xe8] sm:$0xff] %v1554
        %1590 = vst [vmem:[%s1559 + $0xf0] sm:$0xff] %v1555
        %1591 = vst [vmem:[%s1559 + $0xf8] sm:$0xff] %v1556
        %s1592 = sand.u32 %s186, 1
        %s1593 = scalar_lea.sflag [#allocation4], %s1592
        %s1594 = sand.u32 %s186, 1
        %s1595 = smul.addr %s1594, 512
        %s1596 = scalar_lea.vmem [#allocation11], %s1595
        // Predicated region
        $region69: #{tpu_custom_call.1} parent=47 // pred_check
          %p1597 = pneg %p196
        $region70: #{tpu_custom_call.1} parent=47 // pred_check_branch
          %1599 = sbr.rel (%p1597) target = $region72
        $region71: #{tpu_custom_call.1} parent=47 // pred_region
          %s1600 = smul.u32 32, %s26
          %1602 = vsyncadd %s1593, 0
          %s1603 = smul.addr %s1600, 2
          %s1604 = smul.addr %s1603, 8
          %s1605 = scalar_lea.hbm %s7, %s1604
          %s1606 = sshll.u32 %s1596, 4
          %s1607 = int_to_ptr.vmem [resolvable:$true] %s1606
          %s1608 = sshll.u32 %s1605, 4
          %s1609 = int_to_ptr.hbm [resolvable:$true] %s1608
          %1614 = dma.vmem_to_hbm [thread:$0]  %s1607, 8192, %s1609, %s1593, 256, 256, 16
        $region72: #{tpu_custom_call.1} parent=47 // pred_fallthru
          _
      $region48: #{tpu_custom_call.1} parent=5 // pred_fallthru
        _
      %p1615 = scmp.le.s32.totalorder 2, %s21
      // Predicated region
      $region73: #{tpu_custom_call.1} parent=5 // pred_check
        %p1616 = pneg %p1615
      $region74: #{tpu_custom_call.1} parent=5 // pred_check_branch
        %1618 = sbr.rel (%p1616) target = $region76
      $region75: #{tpu_custom_call.1} parent=5 // pred_region
        %s1619 = ssub.s32 %s21, 2
        // Predicated region
        $region77: #{tpu_custom_call.1} parent=75 // pred_check
          %p1620 = pneg %p202
        $region78: #{tpu_custom_call.1} parent=75 // pred_check_branch
          %1622 = sbr.rel (%p1620) target = $region80
        $region79: #{tpu_custom_call.1} parent=75 // pred_region
          %s1623 = sand.u32 %s187, 1
          %s1624 = scalar_lea.sflag [#allocation4], %s1623
          %s1625 = sand.u32 %s187, 1
          %s1626 = smul.addr %s1625, 512
          %s1627 = scalar_lea.vmem [#allocation11], %s1626
          %1629 = dma.done %s1624, 8192
        $region80: #{tpu_custom_call.1} parent=75 // pred_fallthru
          _
      $region76: #{tpu_custom_call.1} parent=5 // pred_fallthru
        _
    $region6: #{tpu_custom_call.1} parent=1 // loop_footer
      %s25 = sadd.s32 1, %s21
    $region7: #{tpu_custom_call.1} parent=1 // loop_footer_branch
      %20 = sbr.rel target = $region3
    $region8: #{tpu_custom_call.1} parent=1 // loop_exit
      _
    %1630 = vsyncpa [#allocation3], 1
    %s1631 = scalar_lea.sflag [#allocation3], 1
    %1632 = vsyncpa %s1631, 1
    %1633 = vsyncpa [#allocation6], 1
    %1634 = vsyncpa [#allocation9], 1
    %1635 = vsyncpa [#allocation4], 1
    %s1636 = scalar_lea.sflag [#allocation4], 1
    %1637 = vsyncpa %s1636, 1

</llo_original>
